<compile_context>
chip_gen: v7x
topology: tpu7x:2x2x1
jax: 0.10.0
libtpu: 0.0.40
codegen_flags: <defaults>
</compile_context>

<pallas_src>
import jax
import jax.numpy as jnp
import numpy as np
from jax.experimental import pallas as pl
from jax.experimental.pallas import tpu as pltpu

PAD = 4                  # max reflection pad (9x9 conv); all convs share the pad-4 halo
KMAX = 2 * PAD + 1       # 9


# ----------------------------------------------------------------------------
# Kernel 1: 1x1-conv projections as pixel-tiled matmuls (proj1, proj2, proj3)
# ----------------------------------------------------------------------------
def _proj_kernel(x1_ref, x2_ref, w1a_ref, w1b_ref, w2_ref, w3_ref,
                 b1_ref, b2_ref, b3_ref, fcat_ref, f1_ref, f2_ref):
    x1 = x1_ref[...]   # (TP, C) bf16
    x2 = x2_ref[...]   # (TP, C) bf16
    # proj1 on the (virtual) concatenation = proj1_F1half(x1) + proj1_F2half(x2)
    fcat = (jnp.dot(x1, w1a_ref[...], preferred_element_type=jnp.float32)
            + jnp.dot(x2, w1b_ref[...], preferred_element_type=jnp.float32)
            + b1_ref[...])
    fcat_ref[...] = fcat.astype(jnp.bfloat16)
    f1_ref[...] = (jnp.dot(x1, w2_ref[...], preferred_element_type=jnp.float32)
                   + b2_ref[...]).astype(jnp.bfloat16)
    f2_ref[...] = (jnp.dot(x2, w3_ref[...], preferred_element_type=jnp.float32)
                   + b3_ref[...]).astype(jnp.bfloat16)
    # TODO(synk): for C < 128 stores/matmuls use masked lanes; if the caller can
    # supply channel-padded (multiple-of-128) features, remove the masking.


# ----------------------------------------------------------------------------
# Kernel 2: reflect halo + multi-scale fusion maps (per-tap MXU matmuls) + blend
# ----------------------------------------------------------------------------
def _fuse_kernel(fcat_ref, f1_ref, f2_ref, w_ref, b_ref, out_ref,
                 pad_ref, col_ref):
    # fcat_ref : (1, H, W, C)   bf16 (whole image of this batch; halo source)
    # f1_ref   : (1, TH, W, C)  bf16
    # f2_ref   : (1, TH, W, C)  bf16
    # w_ref    : (9, 9, C, 8)   bf16 zero-padded tap table (6 convs + 2 zeros)
    # b_ref    : (1, 8)         f32 biases
    # out_ref  : (1, TH, W, C)  f32
    # pad_ref  : (TH+8, W+8, C) bf16 scratch (reflect-halo window)
    # col_ref  : (TH+8, W, C)   bf16 scratch (per-kw aligned column window)
    H = fcat_ref.shape[1]
    TH, W, C = f1_ref.shape[1], f1_ref.shape[2], f1_ref.shape[3]
    r0 = pl.program_id(1) * TH

    # ---- 1. build the (TH+8, W+8, C) reflect-halo window in VMEM ----------
    img = fcat_ref.at[0]                                     # (H, W, C) ref view
    for pr in range(TH + 2 * PAD):
        q = r0 + (pr - PAD)
        src = jnp.where(q < 0, -q, jnp.where(q > H - 1, 2 * (H - 1) - q, q))
        row = img[pl.ds(src, 1), :, :]                       # (1, W, C)
        pad_ref[pl.ds(pr, 1), pl.ds(PAD, W), :] = row
    for j in range(PAD):                                     # column mirrors
        pad_ref[:, pl.ds(j, 1), :] = pad_ref[:, pl.ds(2 * PAD - j, 1), :]
        pad_ref[:, pl.ds(PAD + W + j, 1), :] = pad_ref[:, pl.ds(PAD + W - 2 - j, 1), :]

    # ---- 2. 81 per-tap MXU matmuls into one (TH*W, 8) f32 accumulator -----
    acc = jnp.zeros((TH * W, 8), jnp.float32)
    for kw in range(KMAX):
        # one aligned column-window copy per kw, shared by its 9 kh taps
        col_ref[...] = pad_ref[:, pl.ds(kw, W), :]
        for kh in range(KMAX):
            patch = col_ref[pl.ds(kh, TH), :, :].reshape(TH * W, C)
            acc = acc + jnp.dot(patch, w_ref[kh, kw],
                                preferred_element_type=jnp.float32)

    # ---- 3. sigmoid, average, clamp, blend ---------------------------------
    m = jax.nn.sigmoid(acc + b_ref[...])                     # (TH*W, 8) f32
    third = jnp.float32(1.0 / 3.0)
    a1 = ((m[:, 0:1] + m[:, 1:2] + m[:, 2:3]) * third).reshape(TH, W, 1)
    a2 = ((m[:, 3:4] + m[:, 4:5] + m[:, 5:6]) * third).reshape(TH, W, 1)
    wf1 = jnp.clip(a1, 0.0, 1.0) + jnp.clip(a2, 0.0, 1.0)
    wf2 = jnp.clip(1.0 - a1, 0.0, 1.0) + jnp.clip(1.0 - a2, 0.0, 1.0)
    f1 = f1_ref[0].astype(jnp.float32)
    f2 = f2_ref[0].astype(jnp.float32)
    out_ref[0] = wf1 * f1 + wf2 * f2


# ----------------------------------------------------------------------------
# Tiling helpers
# ----------------------------------------------------------------------------
def _choose_tp(P):
    """Pixel tile for kernel 1 and the (possibly padded) pixel count."""
    for t in (2048, 1024, 512, 256):
        if P % t == 0:
            return t, P
    t = 512 if P >= 512 else 256
    return t, ((P + t - 1) // t) * t


def _pick_th(H):
    """Row-block height for kernel 2 (prefers multiple blocks per image)."""
    for t in (32, 16, 8):
        if H % t == 0 and H > t:
            return t
    for t in (32, 16, 8):
        if H % t == 0:
            return t
    return H   # TODO(synk): pad odd H instead of using a single whole-image block


# ----------------------------------------------------------------------------
# Wrapper
# ----------------------------------------------------------------------------
def fuse_unit_forward(F1, F2, params):
    N, C, H, W = F1.shape
    assert H >= PAD + 1 and W >= PAD + 1, "reflection pad of 4 requires H, W >= 5"
    P = N * H * W

    # ---- module boundary: NCHW -> flattened channels-last pixels, bf16 ----
    # TODO(synk): keep NHWC across the surrounding model to drop these two
    # boundary transposes (one full HBM pass each in XLA).
    x1 = jnp.transpose(F1, (0, 2, 3, 1)).reshape(P, C).astype(jnp.bfloat16)
    x2 = jnp.transpose(F2, (0, 2, 3, 1)).reshape(P, C).astype(jnp.bfloat16)

    TP, P_pad = _choose_tp(P)
    if P_pad != P:
        x1 = jnp.pad(x1, ((0, P_pad - P), (0, 0)))
        x2 = jnp.pad(x2, ((0, P_pad - P), (0, 0)))

    # 1x1-conv weights as (Cin, Cout) matmul operands; proj1 split into its
    # F1-half / F2-half so the concatenated activation never exists.
    w1 = params['proj1_w'][:, :, 0, 0]                        # (C, 2C) = (out, in)
    w1a = jnp.transpose(w1[:, :C]).astype(jnp.bfloat16)       # (C, C)
    w1b = jnp.transpose(w1[:, C:]).astype(jnp.bfloat16)       # (C, C)
    w2 = jnp.transpose(params['proj2_w'][:, :, 0, 0]).astype(jnp.bfloat16)
    w3 = jnp.transpose(params['proj3_w'][:, :, 0, 0]).astype(jnp.bfloat16)
    b1 = params['proj1_b'][None, :].astype(jnp.float32)
    b2 = params['proj2_b'][None, :].astype(jnp.float32)
    b3 = params['proj3_b'][None, :].astype(jnp.float32)

    row_spec = pl.BlockSpec((TP, C), lambda i: (i, 0))
    mat_spec = pl.BlockSpec((C, C), lambda i: (0, 0))
    bias_spec = pl.BlockSpec((1, C), lambda i: (0, 0))

    # bf16 outputs keep even TP=2048 (double-buffered, 2 inputs + 3 outputs)
    # well inside the 32 MiB scoped VMEM limit on all of v5e/v6e/v7x.
    fcat_pc, f1_pc, f2_pc = pl.pallas_call(
        _proj_kernel,
        grid=(P_pad // TP,),
        in_specs=[row_spec, row_spec, mat_spec, mat_spec, mat_spec, mat_spec,
                  bias_spec, bias_spec, bias_spec],
        out_specs=(row_spec, row_spec, row_spec),
        out_shape=(jax.ShapeDtypeStruct((P_pad, C), jnp.bfloat16),
                   jax.ShapeDtypeStruct((P_pad, C), jnp.bfloat16),
                   jax.ShapeDtypeStruct((P_pad, C), jnp.bfloat16)),
        compiler_params=pltpu.CompilerParams(
            dimension_semantics=("parallel",),
            vmem_limit_bytes=32 * 1024 * 1024),
    )(x1, x2, w1a, w1b, w2, w3, b1, b2, b3)

    # Free reshapes to NHWC.  No reflect pad here any more: kernel 2 builds the
    # halo in VMEM, saving a full extra HBM write+read of the padded tensor.
    fcat = fcat_pc[:P].reshape(N, H, W, C)
    f1p = f1_pc[:P].reshape(N, H, W, C)
    f2p = f2_pc[:P].reshape(N, H, W, C)

    # Fusion-map conv weights: (1,C,K,K) -> (9,9,C) zero-padded tap tables,
    # stacked into a (9, 9, C, 8) matmul RHS (6 convs + 2 zero columns).
    def tap_table(name, r):
        wk = jnp.transpose(params[name][0], (1, 2, 0)).astype(jnp.float32)  # (K,K,C)
        p = PAD - r
        return jnp.pad(wk, ((p, p), (p, p), (0, 0)))

    w_all = jnp.stack([tap_table('fuse1x_w', 0), tap_table('fuse3x_w', 1),
                       tap_table('fuse5x_1_w', 2), tap_table('fuse5x_2_w', 2),
                       tap_table('fuse7x_w', 3), tap_table('fuse9x_w', 4)],
                      axis=-1)                                                # (9,9,C,6)
    w_all = jnp.pad(w_all, ((0, 0), (0, 0), (0, 0), (0, 2))).astype(jnp.bfloat16)

    biases = jnp.concatenate(
        [params['fuse1x_b'], params['fuse3x_b'], params['fuse5x_1_b'],
         params['fuse5x_2_b'], params['fuse7x_b'], params['fuse9x_b'],
         jnp.zeros((2,), jnp.float32)]).astype(jnp.float32)[None, :]          # (1, 8)

    TH = _pick_th(H)
    out_nhwc = pl.pallas_call(
        _fuse_kernel,
        grid=(N, H // TH),
        in_specs=[
            pl.BlockSpec((1, H, W, C), lambda n, h: (n, 0, 0, 0)),   # Fcat (halo src, resident per batch)
            pl.BlockSpec((1, TH, W, C), lambda n, h: (n, h, 0, 0)),  # F1'
            pl.BlockSpec((1, TH, W, C), lambda n, h: (n, h, 0, 0)),  # F2'
            pl.BlockSpec((KMAX, KMAX, C, 8), lambda n, h: (0, 0, 0, 0)),
            pl.BlockSpec((1, 8), lambda n, h: (0, 0)),
        ],
        out_specs=pl.BlockSpec((1, TH, W, C), lambda n, h: (n, h, 0, 0)),
        out_shape=jax.ShapeDtypeStruct((N, H, W, C), jnp.float32),
        scratch_shapes=[pltpu.VMEM((TH + 2 * PAD, W + 2 * PAD, C), jnp.bfloat16),
                        pltpu.VMEM((TH + 2 * PAD, W, C), jnp.bfloat16)],
        compiler_params=pltpu.CompilerParams(
            dimension_semantics=("parallel", "parallel"),
            vmem_limit_bytes=32 * 1024 * 1024),
    )(fcat, f1p, f2p, w_all, biases)
    # TODO(synk): for very large H*W, replace the resident whole-image Fcat
    # block with manual halo DMAs (pl.ANY + make_async_copy) to bound VMEM further.

    # ---- module boundary: back to NCHW once ----
    return jnp.transpose(out_nhwc, (0, 3, 1, 2))


# ----------------------------------------------------------------------------
# Deterministic parameter init (shapes from FuseUnit.__init__)
# ----------------------------------------------------------------------------
def init_params(key, C):
    shapes = [('proj1', (C, 2 * C, 1, 1)), ('proj2', (C, C, 1, 1)), ('proj3', (C, C, 1, 1)),
              ('fuse1x', (1, C, 1, 1)), ('fuse3x', (1, C, 3, 3)),
              ('fuse5x_1', (1, C, 5, 5)), ('fuse5x_2', (1, C, 5, 5)),
              ('fuse7x', (1, C, 7, 7)), ('fuse9x', (1, C, 9, 9))]
    keys = jax.random.split(key, 2 * len(shapes))
    params = {}
    for i, (name, shape) in enumerate(shapes):
        params[name + '_w'] = 0.1 * jax.random.normal(keys[2 * i], shape, dtype=jnp.float32)
        params[name + '_b'] = 0.1 * jax.random.normal(keys[2 * i + 1], (shape[0],), dtype=jnp.float32)
    return params


# ----------------------------------------------------------------------------
# Pure-JAX f32 reference (mirrors the PyTorch forward)
# ----------------------------------------------------------------------------
def ref_forward(F1, F2, params):
    dn = ('NCHW', 'OIHW', 'NCHW')
    hi = jax.lax.Precision.HIGHEST

    def conv(x, w, b, pad):
        if pad > 0:
            x = jnp.pad(x, ((0, 0), (0, 0), (pad, pad), (pad, pad)), mode='reflect')
        y = jax.lax.conv_general_dilated(x, w, (1, 1), 'VALID',
                                         dimension_numbers=dn, precision=hi)
        return y + b[None, :, None, None]

    sig = jax.nn.sigmoid
    Fcat = conv(jnp.concatenate([F1, F2], axis=1), params['proj1_w'], params['proj1_b'], 0)
    F1p = conv(F1, params['proj2_w'], params['proj2_b'], 0)
    F2p = conv(F2, params['proj3_w'], params['proj3_b'], 0)

    f1 = sig(conv(Fcat, params['fuse1x_w'], params['fuse1x_b'], 0))
    f3 = sig(conv(Fcat, params['fuse3x_w'], params['fuse3x_b'], 1))
    f5a = sig(conv(Fcat, params['fuse5x_1_w'], params['fuse5x_1_b'], 2))
    a1 = (f1 + f3 + f5a) / 3.0
    fusion_1 = jnp.clip(a1, 0.0, 1.0) * F1p + jnp.clip(1.0 - a1, 0.0, 1.0) * F2p

    f5b = sig(conv(Fcat, params['fuse5x_2_w'], params['fuse5x_2_b'], 2))
    f7 = sig(conv(Fcat, params['fuse7x_w'], params['fuse7x_b'], 3))
    f9 = sig(conv(Fcat, params['fuse9x_w'], params['fuse9x_b'], 4))
    a2 = (f5b + f7 + f9) / 3.0
    fusion_2 = jnp.clip(a2, 0.0, 1.0) * F1p + jnp.clip(1.0 - a2, 0.0, 1.0) * F2p

    return fusion_1 + fusion_2


if __name__ == "__main__":
    N, C, H, W = 2, 4, 16, 16
    key = jax.random.PRNGKey(0)
    k1, k2, kp = jax.random.split(key, 3)
    F1 = jax.random.normal(k1, (N, C, H, W), dtype=jnp.float32)
    F2 = jax.random.normal(k2, (N, C, H, W), dtype=jnp.float32)
    params = init_params(kp, C)

    out = jax.block_until_ready(fuse_unit_forward(F1, F2, params))
    ref = jax.block_until_ready(ref_forward(F1, F2, params))

    # Activations/weights run in bf16 on the MXU (per perf guidance); tolerance
    # reflects bf16 rounding vs the f32/HIGHEST reference (~1e-3 typical).
    np.testing.assert_allclose(np.asarray(out), np.asarray(ref), rtol=2e-2, atol=2e-2)
    print("KERNEL_OK")
</pallas_src>

<mosaic_0001>
module attributes {stable_mosaic.version = 11 : i64} {
  func.func @_proj_kernel(%arg0: i32, %arg1: memref<512x4xbf16, #tpu.memory_space<vmem>>, %arg2: memref<512x4xbf16, #tpu.memory_space<vmem>>, %arg3: memref<4x4xbf16, #tpu.memory_space<vmem>>, %arg4: memref<4x4xbf16, #tpu.memory_space<vmem>>, %arg5: memref<4x4xbf16, #tpu.memory_space<vmem>>, %arg6: memref<4x4xbf16, #tpu.memory_space<vmem>>, %arg7: memref<1x4xf32, #tpu.memory_space<vmem>>, %arg8: memref<1x4xf32, #tpu.memory_space<vmem>>, %arg9: memref<1x4xf32, #tpu.memory_space<vmem>>, %arg10: memref<512x4xbf16, #tpu.memory_space<vmem>>, %arg11: memref<512x4xbf16, #tpu.memory_space<vmem>>, %arg12: memref<512x4xbf16, #tpu.memory_space<vmem>>) attributes {dimension_semantics = [#tpu.dimension_semantics<parallel>], iteration_bounds = array<i64: 1>, scalar_prefetch = 0 : i64, scratch_operands = 0 : i64, tpu.core_type = #tpu.core_type<tc>, window_params = [{transform_indices = @transform_0, window_bounds = array<i64: 512, 4>}, {transform_indices = @transform_1, window_bounds = array<i64: 512, 4>}, {pipeline_mode = #tpu.pipeline_mode<synchronous>, transform_indices = @transform_2, window_bounds = array<i64: 4, 4>}, {pipeline_mode = #tpu.pipeline_mode<synchronous>, transform_indices = @transform_3, window_bounds = array<i64: 4, 4>}, {pipeline_mode = #tpu.pipeline_mode<synchronous>, transform_indices = @transform_4, window_bounds = array<i64: 4, 4>}, {pipeline_mode = #tpu.pipeline_mode<synchronous>, transform_indices = @transform_5, window_bounds = array<i64: 4, 4>}, {pipeline_mode = #tpu.pipeline_mode<synchronous>, transform_indices = @transform_6, window_bounds = array<i64: 1, 4>}, {pipeline_mode = #tpu.pipeline_mode<synchronous>, transform_indices = @transform_7, window_bounds = array<i64: 1, 4>}, {pipeline_mode = #tpu.pipeline_mode<synchronous>, transform_indices = @transform_8, window_bounds = array<i64: 1, 4>}, {transform_indices = @transform_9, window_bounds = array<i64: 512, 4>}, {transform_indices = @transform_10, window_bounds = array<i64: 512, 4>}, {transform_indices = @transform_11, window_bounds = array<i64: 512, 4>}]} {
    %c0 = arith.constant 0 : index
    %c0_0 = arith.constant 0 : index
    %0 = vector.load %arg1[%c0, %c0_0] : memref<512x4xbf16, #tpu.memory_space<vmem>>, vector<512x4xbf16>
    %c0_1 = arith.constant 0 : index
    %c0_2 = arith.constant 0 : index
    %1 = vector.load %arg2[%c0_1, %c0_2] : memref<512x4xbf16, #tpu.memory_space<vmem>>, vector<512x4xbf16>
    %c0_3 = arith.constant 0 : index
    %c0_4 = arith.constant 0 : index
    %2 = vector.load %arg3[%c0_3, %c0_4] : memref<4x4xbf16, #tpu.memory_space<vmem>>, vector<4x4xbf16>
    %cst = arith.constant dense<0.000000e+00> : vector<512x4xf32>
    %3 = tpu.matmul %0, %2, %cst {dimension_numbers = #tpu.dot_dimension_numbers<[1], [0], [0], [1], [0, 0, 1, 1], [], []>} : vector<512x4xbf16>, vector<4x4xbf16>, vector<512x4xf32> -> vector<512x4xf32>
    %c0_5 = arith.constant 0 : index
    %c0_6 = arith.constant 0 : index
    %4 = vector.load %arg4[%c0_5, %c0_6] : memref<4x4xbf16, #tpu.memory_space<vmem>>, vector<4x4xbf16>
    %cst_7 = arith.constant dense<0.000000e+00> : vector<512x4xf32>
    %5 = tpu.matmul %1, %4, %cst_7 {dimension_numbers = #tpu.dot_dimension_numbers<[1], [0], [0], [1], [0, 0, 1, 1], [], []>} : vector<512x4xbf16>, vector<4x4xbf16>, vector<512x4xf32> -> vector<512x4xf32>
    %6 = arith.addf %3, %5 : vector<512x4xf32>
    %c0_8 = arith.constant 0 : index
    %c0_9 = arith.constant 0 : index
    %7 = vector.load %arg7[%c0_8, %c0_9] : memref<1x4xf32, #tpu.memory_space<vmem>>, vector<1x4xf32>
    %8 = vector.broadcast %7 : vector<1x4xf32> to vector<512x4xf32>
    %9 = arith.addf %6, %8 : vector<512x4xf32>
    %10 = arith.truncf %9 : vector<512x4xf32> to vector<512x4xbf16>
    %c0_10 = arith.constant 0 : index
    %c0_11 = arith.constant 0 : index
    %11 = vector.load %arg10[%c0_10, %c0_11] : memref<512x4xbf16, #tpu.memory_space<vmem>>, vector<512x4xbf16>
    tpu.vector_store %arg10[%c0_10, %c0_11], %10 {strides = array<i32>} : memref<512x4xbf16, #tpu.memory_space<vmem>>, vector<512x4xbf16>,
    %c0_12 = arith.constant 0 : index
    %c0_13 = arith.constant 0 : index
    %12 = vector.load %arg5[%c0_12, %c0_13] : memref<4x4xbf16, #tpu.memory_space<vmem>>, vector<4x4xbf16>
    %cst_14 = arith.constant dense<0.000000e+00> : vector<512x4xf32>
    %13 = tpu.matmul %0, %12, %cst_14 {dimension_numbers = #tpu.dot_dimension_numbers<[1], [0], [0], [1], [0, 0, 1, 1], [], []>} : vector<512x4xbf16>, vector<4x4xbf16>, vector<512x4xf32> -> vector<512x4xf32>
    %c0_15 = arith.constant 0 : index
    %c0_16 = arith.constant 0 : index
    %14 = vector.load %arg8[%c0_15, %c0_16] : memref<1x4xf32, #tpu.memory_space<vmem>>, vector<1x4xf32>
    %15 = vector.broadcast %14 : vector<1x4xf32> to vector<512x4xf32>
    %16 = arith.addf %13, %15 : vector<512x4xf32>
    %17 = arith.truncf %16 : vector<512x4xf32> to vector<512x4xbf16>
    %c0_17 = arith.constant 0 : index
    %c0_18 = arith.constant 0 : index
    %18 = vector.load %arg11[%c0_17, %c0_18] : memref<512x4xbf16, #tpu.memory_space<vmem>>, vector<512x4xbf16>
    tpu.vector_store %arg11[%c0_17, %c0_18], %17 {strides = array<i32>} : memref<512x4xbf16, #tpu.memory_space<vmem>>, vector<512x4xbf16>,
    %c0_19 = arith.constant 0 : index
    %c0_20 = arith.constant 0 : index
    %19 = vector.load %arg6[%c0_19, %c0_20] : memref<4x4xbf16, #tpu.memory_space<vmem>>, vector<4x4xbf16>
    %cst_21 = arith.constant dense<0.000000e+00> : vector<512x4xf32>
    %20 = tpu.matmul %1, %19, %cst_21 {dimension_numbers = #tpu.dot_dimension_numbers<[1], [0], [0], [1], [0, 0, 1, 1], [], []>} : vector<512x4xbf16>, vector<4x4xbf16>, vector<512x4xf32> -> vector<512x4xf32>
    %c0_22 = arith.constant 0 : index
    %c0_23 = arith.constant 0 : index
    %21 = vector.load %arg9[%c0_22, %c0_23] : memref<1x4xf32, #tpu.memory_space<vmem>>, vector<1x4xf32>
    %22 = vector.broadcast %21 : vector<1x4xf32> to vector<512x4xf32>
    %23 = arith.addf %20, %22 : vector<512x4xf32>
    %24 = arith.truncf %23 : vector<512x4xf32> to vector<512x4xbf16>
    %c0_24 = arith.constant 0 : index
    %c0_25 = arith.constant 0 : index
    %25 = vector.load %arg12[%c0_24, %c0_25] : memref<512x4xbf16, #tpu.memory_space<vmem>>, vector<512x4xbf16>
    tpu.vector_store %arg12[%c0_24, %c0_25], %24 {strides = array<i32>} : memref<512x4xbf16, #tpu.memory_space<vmem>>, vector<512x4xbf16>,
    return
  }
  func.func @transform_0(%arg0: i32) -> (i32, i32) {
    %c0_i32 = arith.constant 0 : i32
    %c0_i32_0 = arith.constant 0 : i32
    return %arg0, %c0_i32 : i32, i32
  }
  func.func @transform_1(%arg0: i32) -> (i32, i32) {
    %c0_i32 = arith.constant 0 : i32
    %c0_i32_0 = arith.constant 0 : i32
    return %arg0, %c0_i32 : i32, i32
  }
  func.func @transform_2(%arg0: i32) -> (i32, i32) {
    %c0_i32 = arith.constant 0 : i32
    %c0_i32_0 = arith.constant 0 : i32
    %c0_i32_1 = arith.constant 0 : i32
    return %c0_i32, %c0_i32_0 : i32, i32
  }
  func.func @transform_3(%arg0: i32) -> (i32, i32) {
    %c0_i32 = arith.constant 0 : i32
    %c0_i32_0 = arith.constant 0 : i32
    %c0_i32_1 = arith.constant 0 : i32
    return %c0_i32, %c0_i32_0 : i32, i32
  }
  func.func @transform_4(%arg0: i32) -> (i32, i32) {
    %c0_i32 = arith.constant 0 : i32
    %c0_i32_0 = arith.constant 0 : i32
    %c0_i32_1 = arith.constant 0 : i32
    return %c0_i32, %c0_i32_0 : i32, i32
  }
  func.func @transform_5(%arg0: i32) -> (i32, i32) {
    %c0_i32 = arith.constant 0 : i32
    %c0_i32_0 = arith.constant 0 : i32
    %c0_i32_1 = arith.constant 0 : i32
    return %c0_i32, %c0_i32_0 : i32, i32
  }
  func.func @transform_6(%arg0: i32) -> (i32, i32) {
    %c0_i32 = arith.constant 0 : i32
    %c0_i32_0 = arith.constant 0 : i32
    %c0_i32_1 = arith.constant 0 : i32
    return %c0_i32, %c0_i32_0 : i32, i32
  }
  func.func @transform_7(%arg0: i32) -> (i32, i32) {
    %c0_i32 = arith.constant 0 : i32
    %c0_i32_0 = arith.constant 0 : i32
    %c0_i32_1 = arith.constant 0 : i32
    return %c0_i32, %c0_i32_0 : i32, i32
  }
  func.func @transform_8(%arg0: i32) -> (i32, i32) {
    %c0_i32 = arith.constant 0 : i32
    %c0_i32_0 = arith.constant 0 : i32
    %c0_i32_1 = arith.constant 0 : i32
    return %c0_i32, %c0_i32_0 : i32, i32
  }
  func.func @transform_9(%arg0: i32) -> (i32, i32) {
    %c0_i32 = arith.constant 0 : i32
    %c0_i32_0 = arith.constant 0 : i32
    return %arg0, %c0_i32 : i32, i32
  }
  func.func @transform_10(%arg0: i32) -> (i32, i32) {
    %c0_i32 = arith.constant 0 : i32
    %c0_i32_0 = arith.constant 0 : i32
    return %arg0, %c0_i32 : i32, i32
  }
  func.func @transform_11(%arg0: i32) -> (i32, i32) {
    %c0_i32 = arith.constant 0 : i32
    %c0_i32_0 = arith.constant 0 : i32
    return %arg0, %c0_i32 : i32, i32
  }
}

</mosaic_0001>

<llo_original>
// kernel: tpu_custom_call.1
$region0: #{tpu_custom_call.1}
  #allocation0 [shape = 'u32[]', space=smem, size = 0x4, offset = 0x4, fixed_abs, tag = 'smem constant byte address 0x4 - core index']
  #allocation1 [shape = 'u32[144,128]{1,0:T(1,128)}', space=vmem, size = 0x12000, scoped, tag = 'internal scratch']
  %s0 = inlined_call_operand.vmem [shape: bf16[512,4], index: 0, kind: input, shape index: {}]
  %s1 = inlined_call_operand.vmem [shape: bf16[512,4], index: 1, kind: input, shape index: {}]
  %s2 = inlined_call_operand.vmem [shape: bf16[4,4], index: 2, kind: input, shape index: {}]
  %s3 = inlined_call_operand.vmem [shape: bf16[4,4], index: 3, kind: input, shape index: {}]
  %s4 = inlined_call_operand.vmem [shape: bf16[4,4], index: 4, kind: input, shape index: {}]
  %s5 = inlined_call_operand.vmem [shape: bf16[4,4], index: 5, kind: input, shape index: {}]
  %s6 = inlined_call_operand.vmem [shape: f32[1,4], index: 6, kind: input, shape index: {}]
  %s7 = inlined_call_operand.vmem [shape: f32[1,4], index: 7, kind: input, shape index: {}]
  %s8 = inlined_call_operand.vmem [shape: f32[1,4], index: 8, kind: input, shape index: {}]
  %s9 = inlined_call_operand.vmem [shape: bf16[512,4], index: 9, kind: output, shape index: {0}]
  %s10 = inlined_call_operand.vmem [shape: bf16[512,4], index: 10, kind: output, shape index: {1}]
  %s11 = inlined_call_operand.vmem [shape: bf16[512,4], index: 11, kind: output, shape index: {2}]
  %12 = xla_tuple %s9, %s10, %s11
  %s13 = sld [smem:[#allocation0]]
  $region62: #{tpu_custom_call.1} parent=0
    _
  %s15 = ssub.s32 1, %s13
  %s16 = scalar_select 0, %s15, %s13
  // Predicated region
  $region2: #{tpu_custom_call.1} parent=0 // pred_check
    _
  $region3: #{tpu_custom_call.1} parent=0 // pred_check_branch
    %18 = sbr.rel (0) target = $region5
  $region4: #{tpu_custom_call.1} parent=0 // pred_region
    _
  $region5: #{tpu_custom_call.1} parent=0 // pred_fallthru
    _
  // Predicated region
  $region6: #{tpu_custom_call.1} parent=0 // pred_check
    _
  $region7: #{tpu_custom_call.1} parent=0 // pred_check_branch
    %20 = sbr.rel (0) target = $region9
  $region8: #{tpu_custom_call.1} parent=0 // pred_region
    _
  $region9: #{tpu_custom_call.1} parent=0 // pred_fallthru
    _
  // Predicated region
  $region10: #{tpu_custom_call.1} parent=0 // pred_check
    _
  $region11: #{tpu_custom_call.1} parent=0 // pred_check_branch
    %22 = sbr.rel (0) target = $region13
  $region12: #{tpu_custom_call.1} parent=0 // pred_region
    _
  $region13: #{tpu_custom_call.1} parent=0 // pred_fallthru
    _
  // Predicated region
  $region14: #{tpu_custom_call.1} parent=0 // pred_check
    _
  $region15: #{tpu_custom_call.1} parent=0 // pred_check_branch
    %24 = sbr.rel (0) target = $region17
  $region16: #{tpu_custom_call.1} parent=0 // pred_region
    _
  $region17: #{tpu_custom_call.1} parent=0 // pred_fallthru
    _
  // Predicated region
  $region18: #{tpu_custom_call.1} parent=0 // pred_check
    _
  $region19: #{tpu_custom_call.1} parent=0 // pred_check_branch
    %26 = sbr.rel (0) target = $region21
  $region20: #{tpu_custom_call.1} parent=0 // pred_region
    _
  $region21: #{tpu_custom_call.1} parent=0 // pred_fallthru
    _
  // Predicated region
  $region22: #{tpu_custom_call.1} parent=0 // pred_check
    _
  $region23: #{tpu_custom_call.1} parent=0 // pred_check_branch
    %28 = sbr.rel (0) target = $region25
  $region24: #{tpu_custom_call.1} parent=0 // pred_region
    _
  $region25: #{tpu_custom_call.1} parent=0 // pred_fallthru
    _
  // Predicated region
  $region26: #{tpu_custom_call.1} parent=0 // pred_check
    _
  $region27: #{tpu_custom_call.1} parent=0 // pred_check_branch
    %30 = sbr.rel (0) target = $region29
  $region28: #{tpu_custom_call.1} parent=0 // pred_region
    _
  $region29: #{tpu_custom_call.1} parent=0 // pred_fallthru
    _
  // Predicated region
  $region30: #{tpu_custom_call.1} parent=0 // pred_check
    _
  $region31: #{tpu_custom_call.1} parent=0 // pred_check_branch
    %32 = sbr.rel (0) target = $region33
  $region32: #{tpu_custom_call.1} parent=0 // pred_region
    _
  $region33: #{tpu_custom_call.1} parent=0 // pred_fallthru
    _
  // Predicated region
  $region34: #{tpu_custom_call.1} parent=0 // pred_check
    _
  $region35: #{tpu_custom_call.1} parent=0 // pred_check_branch
    %34 = sbr.rel (0) target = $region37
  $region36: #{tpu_custom_call.1} parent=0 // pred_region
    _
  $region37: #{tpu_custom_call.1} parent=0 // pred_fallthru
    _
  %v36 = vld [vmem:[%s0] sm:$0xf]
  %v37 = vld [vmem:[%s0 + $0x4] sm:$0xf]
  %v38 = vld [vmem:[%s0 + $0x8] sm:$0xf]
  %v39 = vld [vmem:[%s0 + $0xc] sm:$0xf]
  %v40 = vld [vmem:[%s0 + $0x10] sm:$0xf]
  %v41 = vld [vmem:[%s0 + $0x14] sm:$0xf]
  %v42 = vld [vmem:[%s0 + $0x18] sm:$0xf]
  %v43 = vld [vmem:[%s0 + $0x1c] sm:$0xf]
  %v44 = vld [vmem:[%s0 + $0x20] sm:$0xf]
  %v45 = vld [vmem:[%s0 + $0x24] sm:$0xf]
  %v46 = vld [vmem:[%s0 + $0x28] sm:$0xf]
  %v47 = vld [vmem:[%s0 + $0x2c] sm:$0xf]
  %v48 = vld [vmem:[%s0 + $0x30] sm:$0xf]
  %v49 = vld [vmem:[%s0 + $0x34] sm:$0xf]
  %v50 = vld [vmem:[%s0 + $0x38] sm:$0xf]
  %v51 = vld [vmem:[%s0 + $0x3c] sm:$0xf]
  %v52 = vld [vmem:[%s0 + $0x40] sm:$0xf]
  %v53 = vld [vmem:[%s0 + $0x44] sm:$0xf]
  %v54 = vld [vmem:[%s0 + $0x48] sm:$0xf]
  %v55 = vld [vmem:[%s0 + $0x4c] sm:$0xf]
  %v56 = vld [vmem:[%s0 + $0x50] sm:$0xf]
  %v57 = vld [vmem:[%s0 + $0x54] sm:$0xf]
  %v58 = vld [vmem:[%s0 + $0x58] sm:$0xf]
  %v59 = vld [vmem:[%s0 + $0x5c] sm:$0xf]
  %v60 = vld [vmem:[%s0 + $0x60] sm:$0xf]
  %v61 = vld [vmem:[%s0 + $0x64] sm:$0xf]
  %v62 = vld [vmem:[%s0 + $0x68] sm:$0xf]
  %v63 = vld [vmem:[%s0 + $0x6c] sm:$0xf]
  %v64 = vld [vmem:[%s0 + $0x70] sm:$0xf]
  %v65 = vld [vmem:[%s0 + $0x74] sm:$0xf]
  %v66 = vld [vmem:[%s0 + $0x78] sm:$0xf]
  %v67 = vld [vmem:[%s0 + $0x7c] sm:$0xf]
  %v68 = vld [vmem:[%s0 + $0x80] sm:$0xf]
  %v69 = vld [vmem:[%s0 + $0x84] sm:$0xf]
  %v70 = vld [vmem:[%s0 + $0x88] sm:$0xf]
  %v71 = vld [vmem:[%s0 + $0x8c] sm:$0xf]
  %v72 = vld [vmem:[%s0 + $0x90] sm:$0xf]
  %v73 = vld [vmem:[%s0 + $0x94] sm:$0xf]
  %v74 = vld [vmem:[%s0 + $0x98] sm:$0xf]
  %v75 = vld [vmem:[%s0 + $0x9c] sm:$0xf]
  %v76 = vld [vmem:[%s0 + $0xa0] sm:$0xf]
  %v77 = vld [vmem:[%s0 + $0xa4] sm:$0xf]
  %v78 = vld [vmem:[%s0 + $0xa8] sm:$0xf]
  %v79 = vld [vmem:[%s0 + $0xac] sm:$0xf]
  %v80 = vld [vmem:[%s0 + $0xb0] sm:$0xf]
  %v81 = vld [vmem:[%s0 + $0xb4] sm:$0xf]
  %v82 = vld [vmem:[%s0 + $0xb8] sm:$0xf]
  %v83 = vld [vmem:[%s0 + $0xbc] sm:$0xf]
  %v84 = vld [vmem:[%s0 + $0xc0] sm:$0xf]
  %v85 = vld [vmem:[%s0 + $0xc4] sm:$0xf]
  %v86 = vld [vmem:[%s0 + $0xc8] sm:$0xf]
  %v87 = vld [vmem:[%s0 + $0xcc] sm:$0xf]
  %v88 = vld [vmem:[%s0 + $0xd0] sm:$0xf]
  %v89 = vld [vmem:[%s0 + $0xd4] sm:$0xf]
  %v90 = vld [vmem:[%s0 + $0xd8] sm:$0xf]
  %v91 = vld [vmem:[%s0 + $0xdc] sm:$0xf]
  %v92 = vld [vmem:[%s0 + $0xe0] sm:$0xf]
  %v93 = vld [vmem:[%s0 + $0xe4] sm:$0xf]
  %v94 = vld [vmem:[%s0 + $0xe8] sm:$0xf]
  %v95 = vld [vmem:[%s0 + $0xec] sm:$0xf]
  %v96 = vld [vmem:[%s0 + $0xf0] sm:$0xf]
  %v97 = vld [vmem:[%s0 + $0xf4] sm:$0xf]
  %v98 = vld [vmem:[%s0 + $0xf8] sm:$0xf]
  %v99 = vld [vmem:[%s0 + $0xfc] sm:$0xf]
  %v100 = vld [vmem:[%s1] sm:$0xf]
  %v101 = vld [vmem:[%s1 + $0x4] sm:$0xf]
  %v102 = vld [vmem:[%s1 + $0x8] sm:$0xf]
  %v103 = vld [vmem:[%s1 + $0xc] sm:$0xf]
  %v104 = vld [vmem:[%s1 + $0x10] sm:$0xf]
  %v105 = vld [vmem:[%s1 + $0x14] sm:$0xf]
  %v106 = vld [vmem:[%s1 + $0x18] sm:$0xf]
  %v107 = vld [vmem:[%s1 + $0x1c] sm:$0xf]
  %v108 = vld [vmem:[%s1 + $0x20] sm:$0xf]
  %v109 = vld [vmem:[%s1 + $0x24] sm:$0xf]
  %v110 = vld [vmem:[%s1 + $0x28] sm:$0xf]
  %v111 = vld [vmem:[%s1 + $0x2c] sm:$0xf]
  %v112 = vld [vmem:[%s1 + $0x30] sm:$0xf]
  %v113 = vld [vmem:[%s1 + $0x34] sm:$0xf]
  %v114 = vld [vmem:[%s1 + $0x38] sm:$0xf]
  %v115 = vld [vmem:[%s1 + $0x3c] sm:$0xf]
  %v116 = vld [vmem:[%s1 + $0x40] sm:$0xf]
  %v117 = vld [vmem:[%s1 + $0x44] sm:$0xf]
  %v118 = vld [vmem:[%s1 + $0x48] sm:$0xf]
  %v119 = vld [vmem:[%s1 + $0x4c] sm:$0xf]
  %v120 = vld [vmem:[%s1 + $0x50] sm:$0xf]
  %v121 = vld [vmem:[%s1 + $0x54] sm:$0xf]
  %v122 = vld [vmem:[%s1 + $0x58] sm:$0xf]
  %v123 = vld [vmem:[%s1 + $0x5c] sm:$0xf]
  %v124 = vld [vmem:[%s1 + $0x60] sm:$0xf]
  %v125 = vld [vmem:[%s1 + $0x64] sm:$0xf]
  %v126 = vld [vmem:[%s1 + $0x68] sm:$0xf]
  %v127 = vld [vmem:[%s1 + $0x6c] sm:$0xf]
  %v128 = vld [vmem:[%s1 + $0x70] sm:$0xf]
  %v129 = vld [vmem:[%s1 + $0x74] sm:$0xf]
  %v130 = vld [vmem:[%s1 + $0x78] sm:$0xf]
  %v131 = vld [vmem:[%s1 + $0x7c] sm:$0xf]
  %v132 = vld [vmem:[%s1 + $0x80] sm:$0xf]
  %v133 = vld [vmem:[%s1 + $0x84] sm:$0xf]
  %v134 = vld [vmem:[%s1 + $0x88] sm:$0xf]
  %v135 = vld [vmem:[%s1 + $0x8c] sm:$0xf]
  %v136 = vld [vmem:[%s1 + $0x90] sm:$0xf]
  %v137 = vld [vmem:[%s1 + $0x94] sm:$0xf]
  %v138 = vld [vmem:[%s1 + $0x98] sm:$0xf]
  %v139 = vld [vmem:[%s1 + $0x9c] sm:$0xf]
  %v140 = vld [vmem:[%s1 + $0xa0] sm:$0xf]
  %v141 = vld [vmem:[%s1 + $0xa4] sm:$0xf]
  %v142 = vld [vmem:[%s1 + $0xa8] sm:$0xf]
  %v143 = vld [vmem:[%s1 + $0xac] sm:$0xf]
  %v144 = vld [vmem:[%s1 + $0xb0] sm:$0xf]
  %v145 = vld [vmem:[%s1 + $0xb4] sm:$0xf]
  %v146 = vld [vmem:[%s1 + $0xb8] sm:$0xf]
  %v147 = vld [vmem:[%s1 + $0xbc] sm:$0xf]
  %v148 = vld [vmem:[%s1 + $0xc0] sm:$0xf]
  %v149 = vld [vmem:[%s1 + $0xc4] sm:$0xf]
  %v150 = vld [vmem:[%s1 + $0xc8] sm:$0xf]
  %v151 = vld [vmem:[%s1 + $0xcc] sm:$0xf]
  %v152 = vld [vmem:[%s1 + $0xd0] sm:$0xf]
  %v153 = vld [vmem:[%s1 + $0xd4] sm:$0xf]
  %v154 = vld [vmem:[%s1 + $0xd8] sm:$0xf]
  %v155 = vld [vmem:[%s1 + $0xdc] sm:$0xf]
  %v156 = vld [vmem:[%s1 + $0xe0] sm:$0xf]
  %v157 = vld [vmem:[%s1 + $0xe4] sm:$0xf]
  %v158 = vld [vmem:[%s1 + $0xe8] sm:$0xf]
  %v159 = vld [vmem:[%s1 + $0xec] sm:$0xf]
  %v160 = vld [vmem:[%s1 + $0xf0] sm:$0xf]
  %v161 = vld [vmem:[%s1 + $0xf4] sm:$0xf]
  %v162 = vld [vmem:[%s1 + $0xf8] sm:$0xf]
  %v163 = vld [vmem:[%s1 + $0xfc] sm:$0xf]
  %v164 = vld [vmem:[%s2] sm:$0x3]
  %v165 = vld [vmem:[%s3] sm:$0x3]
  %v230 = vunpack.c.l.b16 %v100
  %v231 = vunpack.c.l.b16 %v101
  %v232 = vunpack.c.l.b16 %v102
  %v233 = vunpack.c.l.b16 %v103
  %v234 = vunpack.c.l.b16 %v104
  %v235 = vunpack.c.l.b16 %v105
  %v236 = vunpack.c.l.b16 %v106
  %v237 = vunpack.c.l.b16 %v107
  %v238 = vunpack.c.l.b16 %v108
  %v239 = vunpack.c.l.b16 %v109
  %v240 = vunpack.c.l.b16 %v110
  %v241 = vunpack.c.l.b16 %v111
  %v242 = vunpack.c.l.b16 %v112
  %v243 = vunpack.c.l.b16 %v113
  %v244 = vunpack.c.l.b16 %v114
  %v245 = vunpack.c.l.b16 %v115
  %v246 = vunpack.c.l.b16 %v116
  %v247 = vunpack.c.l.b16 %v117
  %v248 = vunpack.c.l.b16 %v118
  %v249 = vunpack.c.l.b16 %v119
  %v250 = vunpack.c.l.b16 %v120
  %v251 = vunpack.c.l.b16 %v121
  %v252 = vunpack.c.l.b16 %v122
  %v253 = vunpack.c.l.b16 %v123
  %v254 = vunpack.c.l.b16 %v124
  %v255 = vunpack.c.l.b16 %v125
  %v256 = vunpack.c.l.b16 %v126
  %v257 = vunpack.c.l.b16 %v127
  %v258 = vunpack.c.l.b16 %v128
  %v259 = vunpack.c.l.b16 %v129
  %v260 = vunpack.c.l.b16 %v130
  %v261 = vunpack.c.l.b16 %v131
  %v262 = vunpack.c.l.b16 %v132
  %v263 = vunpack.c.l.b16 %v133
  %v264 = vunpack.c.l.b16 %v134
  %v265 = vunpack.c.l.b16 %v135
  %v266 = vunpack.c.l.b16 %v136
  %v267 = vunpack.c.l.b16 %v137
  %v268 = vunpack.c.l.b16 %v138
  %v269 = vunpack.c.l.b16 %v139
  %v270 = vunpack.c.l.b16 %v140
  %v271 = vunpack.c.l.b16 %v141
  %v272 = vunpack.c.l.b16 %v142
  %v273 = vunpack.c.l.b16 %v143
  %v274 = vunpack.c.l.b16 %v144
  %v275 = vunpack.c.l.b16 %v145
  %v276 = vunpack.c.l.b16 %v146
  %v277 = vunpack.c.l.b16 %v147
  %v278 = vunpack.c.l.b16 %v148
  %v279 = vunpack.c.l.b16 %v149
  %v280 = vunpack.c.l.b16 %v150
  %v281 = vunpack.c.l.b16 %v151
  %v282 = vunpack.c.l.b16 %v152
  %v283 = vunpack.c.l.b16 %v153
  %v284 = vunpack.c.l.b16 %v154
  %v285 = vunpack.c.l.b16 %v155
  %v286 = vunpack.c.l.b16 %v156
  %v287 = vunpack.c.l.b16 %v157
  %v288 = vunpack.c.l.b16 %v158
  %v289 = vunpack.c.l.b16 %v159
  %v290 = vunpack.c.l.b16 %v160
  %v291 = vunpack.c.l.b16 %v161
  %v292 = vunpack.c.l.b16 %v162
  %v293 = vunpack.c.l.b16 %v163
  %v294 = vpack.c.b16 %v231, %v230
  %v295 = vpack.c.b16 %v233, %v232
  %v296 = vpack.c.b16 %v235, %v234
  %v297 = vpack.c.b16 %v237, %v236
  %v298 = vpack.c.b16 %v239, %v238
  %v299 = vpack.c.b16 %v241, %v240
  %v300 = vpack.c.b16 %v243, %v242
  %v301 = vpack.c.b16 %v245, %v244
  %v302 = vpack.c.b16 %v247, %v246
  %v303 = vpack.c.b16 %v249, %v248
  %v304 = vpack.c.b16 %v251, %v250
  %v305 = vpack.c.b16 %v253, %v252
  %v306 = vpack.c.b16 %v255, %v254
  %v307 = vpack.c.b16 %v257, %v256
  %v308 = vpack.c.b16 %v259, %v258
  %v309 = vpack.c.b16 %v261, %v260
  %v310 = vpack.c.b16 %v263, %v262
  %v311 = vpack.c.b16 %v265, %v264
  %v312 = vpack.c.b16 %v267, %v266
  %v313 = vpack.c.b16 %v269, %v268
  %v314 = vpack.c.b16 %v271, %v270
  %v315 = vpack.c.b16 %v273, %v272
  %v316 = vpack.c.b16 %v275, %v274
  %v317 = vpack.c.b16 %v277, %v276
  %v318 = vpack.c.b16 %v279, %v278
  %v319 = vpack.c.b16 %v281, %v280
  %v320 = vpack.c.b16 %v283, %v282
  %v321 = vpack.c.b16 %v285, %v284
  %v322 = vpack.c.b16 %v287, %v286
  %v323 = vpack.c.b16 %v289, %v288
  %v324 = vpack.c.b16 %v291, %v290
  %v325 = vpack.c.b16 %v293, %v292
  %vm326 = vcmask 31744
  %v328 = vsel %vm326, %v294, 0
  %v331 = vsel %vm326, %v295, 0
  %v334 = vsel %vm326, %v296, 0
  %v337 = vsel %vm326, %v297, 0
  %v340 = vsel %vm326, %v298, 0
  %v343 = vsel %vm326, %v299, 0
  %v346 = vsel %vm326, %v300, 0
  %v349 = vsel %vm326, %v301, 0
  %v352 = vsel %vm326, %v302, 0
  %v355 = vsel %vm326, %v303, 0
  %v358 = vsel %vm326, %v304, 0
  %v361 = vsel %vm326, %v305, 0
  %v364 = vsel %vm326, %v306, 0
  %v367 = vsel %vm326, %v307, 0
  %v370 = vsel %vm326, %v308, 0
  %v373 = vsel %vm326, %v309, 0
  %v376 = vsel %vm326, %v310, 0
  %v379 = vsel %vm326, %v311, 0
  %v382 = vsel %vm326, %v312, 0
  %v385 = vsel %vm326, %v313, 0
  %v388 = vsel %vm326, %v314, 0
  %v391 = vsel %vm326, %v315, 0
  %v394 = vsel %vm326, %v316, 0
  %v397 = vsel %vm326, %v317, 0
  %v400 = vsel %vm326, %v318, 0
  %v403 = vsel %vm326, %v319, 0
  %v406 = vsel %vm326, %v320, 0
  %v409 = vsel %vm326, %v321, 0
  %v412 = vsel %vm326, %v322, 0
  %v415 = vsel %vm326, %v323, 0
  %v418 = vsel %vm326, %v324, 0
  %v421 = vsel %vm326, %v325, 0
  %vm423 = vcmask 1041408
  %v425 = vsel %vm423, %v165, 0
  %427 = vmatprep.subr.bf16.mxu0 0
  %428 = vmatpush1.bf16.msra.mxu0 %v425
  %429 = vmatprep.subr.bf16.mxu0 0
  %430 = vmatpush1.bf16.msra.mxu0 0
  %431 = vmatprep.subr.bf16.mxu0 0
  %432 = vmatpush1.bf16.msra.mxu0 0
  %433 = vmatprep.subr.bf16.mxu0 0
  %434 = vmatpush1.bf16.msra.mxu0 0
  %435 = vmatprep.subr.bf16.mxu0 0
  %436 = vmatpush1.bf16.msra.mxu0 0
  %437 = vmatprep.subr.bf16.mxu0 0
  %438 = vmatpush1.bf16.msra.mxu0 0
  %439 = vmatprep.subr.bf16.mxu0 0
  %440 = vmatpush1.bf16.msra.mxu0 0
  %441 = vmatprep.subr.bf16.mxu0 0
  %442 = vmatpush1.bf16.msra.mxu0 0
  %443 = vmatprep.subr.bf16.mxu0 0
  %444 = vmatpush1.bf16.msra.mxu0 0
  %445 = vmatprep.subr.bf16.mxu0 0
  %446 = vmatpush1.bf16.msra.mxu0 0
  %447 = vmatprep.subr.bf16.mxu0 0
  %448 = vmatpush1.bf16.msra.mxu0 0
  %449 = vmatprep.subr.bf16.mxu0 0
  %450 = vmatpush1.bf16.msra.mxu0 0
  %451 = vmatprep.subr.bf16.mxu0 0
  %452 = vmatpush1.bf16.msra.mxu0 0
  %453 = vmatprep.subr.bf16.mxu0 0
  %454 = vmatpush1.bf16.msra.mxu0 0
  %455 = vmatprep.subr.bf16.mxu0 0
  %456 = vmatpush1.bf16.msra.mxu0 0
  %457 = vmatprep.subr.bf16.mxu0 0
  %458 = vmatpush1.bf16.msra.mxu0 0
  %459 = vmatprep.mubr.bf16.mxu0 0
  %460 = vmatmul.mubr.bf16.gmra.mrb[0].mxu0 %v328
  %v461 = vpop.f32.mrb[0].mxu0
  %v462 = vadd.f32 0.0, %v461
  %v463 = vpop.f32.mrb[0].mxu0
  %v464 = vpop.f32.mrb[0].mxu0
  %v465 = vadd.f32 0.0, %v464
  %v466 = vpop.f32.mrb[0].mxu0
  %467 = vmatprep.mubr.bf16.mxu0 0
  %468 = vmatmul.mubr.bf16.gmra.mrb[0].mxu0 %v331
  %v469 = vpop.f32.mrb[0].mxu0
  %v470 = vadd.f32 0.0, %v469
  %v471 = vpop.f32.mrb[0].mxu0
  %v472 = vpop.f32.mrb[0].mxu0
  %v473 = vadd.f32 0.0, %v472
  %v474 = vpop.f32.mrb[0].mxu0
  %475 = vmatprep.mubr.bf16.mxu0 0
  %476 = vmatmul.mubr.bf16.gmra.mrb[0].mxu0 %v334
  %v477 = vpop.f32.mrb[0].mxu0
  %v478 = vadd.f32 0.0, %v477
  %v479 = vpop.f32.mrb[0].mxu0
  %v480 = vpop.f32.mrb[0].mxu0
  %v481 = vadd.f32 0.0, %v480
  %v482 = vpop.f32.mrb[0].mxu0
  %483 = vmatprep.mubr.bf16.mxu0 0
  %484 = vmatmul.mubr.bf16.gmra.mrb[0].mxu0 %v337
  %v485 = vpop.f32.mrb[0].mxu0
  %v486 = vadd.f32 0.0, %v485
  %v487 = vpop.f32.mrb[0].mxu0
  %v488 = vpop.f32.mrb[0].mxu0
  %v489 = vadd.f32 0.0, %v488
  %v490 = vpop.f32.mrb[0].mxu0
  %491 = vmatprep.mubr.bf16.mxu0 0
  %492 = vmatmul.mubr.bf16.gmra.mrb[0].mxu0 %v340
  %v493 = vpop.f32.mrb[0].mxu0
  %v494 = vadd.f32 0.0, %v493
  %v495 = vpop.f32.mrb[0].mxu0
  %v496 = vpop.f32.mrb[0].mxu0
  %v497 = vadd.f32 0.0, %v496
  %v498 = vpop.f32.mrb[0].mxu0
  %499 = vmatprep.mubr.bf16.mxu0 0
  %500 = vmatmul.mubr.bf16.gmra.mrb[0].mxu0 %v343
  %v501 = vpop.f32.mrb[0].mxu0
  %v502 = vadd.f32 0.0, %v501
  %v503 = vpop.f32.mrb[0].mxu0
  %v504 = vpop.f32.mrb[0].mxu0
  %v505 = vadd.f32 0.0, %v504
  %v506 = vpop.f32.mrb[0].mxu0
  %507 = vmatprep.mubr.bf16.mxu0 0
  %508 = vmatmul.mubr.bf16.gmra.mrb[0].mxu0 %v346
  %v509 = vpop.f32.mrb[0].mxu0
  %v510 = vadd.f32 0.0, %v509
  %v511 = vpop.f32.mrb[0].mxu0
  %v512 = vpop.f32.mrb[0].mxu0
  %v513 = vadd.f32 0.0, %v512
  %v514 = vpop.f32.mrb[0].mxu0
  %515 = vmatprep.mubr.bf16.mxu0 0
  %516 = vmatmul.mubr.bf16.gmra.mrb[0].mxu0 %v349
  %v517 = vpop.f32.mrb[0].mxu0
  %v518 = vadd.f32 0.0, %v517
  %v519 = vpop.f32.mrb[0].mxu0
  %v520 = vpop.f32.mrb[0].mxu0
  %v521 = vadd.f32 0.0, %v520
  %v522 = vpop.f32.mrb[0].mxu0
  %523 = vmatprep.mubr.bf16.mxu0 0
  %524 = vmatmul.mubr.bf16.gmra.mrb[0].mxu0 %v352
  %v525 = vpop.f32.mrb[0].mxu0
  %v526 = vadd.f32 0.0, %v525
  %v527 = vpop.f32.mrb[0].mxu0
  %v528 = vpop.f32.mrb[0].mxu0
  %v529 = vadd.f32 0.0, %v528
  %v530 = vpop.f32.mrb[0].mxu0
  %531 = vmatprep.mubr.bf16.mxu0 0
  %532 = vmatmul.mubr.bf16.gmra.mrb[0].mxu0 %v355
  %v533 = vpop.f32.mrb[0].mxu0
  %v534 = vadd.f32 0.0, %v533
  %v535 = vpop.f32.mrb[0].mxu0
  %v536 = vpop.f32.mrb[0].mxu0
  %v537 = vadd.f32 0.0, %v536
  %v538 = vpop.f32.mrb[0].mxu0
  %539 = vmatprep.mubr.bf16.mxu0 0
  %540 = vmatmul.mubr.bf16.gmra.mrb[0].mxu0 %v358
  %v541 = vpop.f32.mrb[0].mxu0
  %v542 = vadd.f32 0.0, %v541
  %v543 = vpop.f32.mrb[0].mxu0
  %v544 = vpop.f32.mrb[0].mxu0
  %v545 = vadd.f32 0.0, %v544
  %v546 = vpop.f32.mrb[0].mxu0
  %547 = vmatprep.mubr.bf16.mxu0 0
  %548 = vmatmul.mubr.bf16.gmra.mrb[0].mxu0 %v361
  %v549 = vpop.f32.mrb[0].mxu0
  %v550 = vadd.f32 0.0, %v549
  %v551 = vpop.f32.mrb[0].mxu0
  %v552 = vpop.f32.mrb[0].mxu0
  %v553 = vadd.f32 0.0, %v552
  %v554 = vpop.f32.mrb[0].mxu0
  %555 = vmatprep.mubr.bf16.mxu0 0
  %556 = vmatmul.mubr.bf16.gmra.mrb[0].mxu0 %v364
  %v557 = vpop.f32.mrb[0].mxu0
  %v558 = vadd.f32 0.0, %v557
  %v559 = vpop.f32.mrb[0].mxu0
  %v560 = vpop.f32.mrb[0].mxu0
  %v561 = vadd.f32 0.0, %v560
  %v562 = vpop.f32.mrb[0].mxu0
  %563 = vmatprep.mubr.bf16.mxu0 0
  %564 = vmatmul.mubr.bf16.gmra.mrb[0].mxu0 %v367
  %v565 = vpop.f32.mrb[0].mxu0
  %v566 = vadd.f32 0.0, %v565
  %v567 = vpop.f32.mrb[0].mxu0
  %v568 = vpop.f32.mrb[0].mxu0
  %v569 = vadd.f32 0.0, %v568
  %v570 = vpop.f32.mrb[0].mxu0
  %571 = vmatprep.mubr.bf16.mxu0 0
  %572 = vmatmul.mubr.bf16.gmra.mrb[0].mxu0 %v370
  %v573 = vpop.f32.mrb[0].mxu0
  %v574 = vadd.f32 0.0, %v573
  %v575 = vpop.f32.mrb[0].mxu0
  %v576 = vpop.f32.mrb[0].mxu0
  %v577 = vadd.f32 0.0, %v576
  %v578 = vpop.f32.mrb[0].mxu0
  %579 = vmatprep.mubr.bf16.mxu0 0
  %580 = vmatmul.mubr.bf16.gmra.mrb[0].mxu0 %v373
  %v581 = vpop.f32.mrb[0].mxu0
  %v582 = vadd.f32 0.0, %v581
  %v583 = vpop.f32.mrb[0].mxu0
  %v584 = vpop.f32.mrb[0].mxu0
  %v585 = vadd.f32 0.0, %v584
  %v586 = vpop.f32.mrb[0].mxu0
  %587 = vmatprep.mubr.bf16.mxu0 0
  %588 = vmatmul.mubr.bf16.gmra.mrb[0].mxu0 %v376
  %v589 = vpop.f32.mrb[0].mxu0
  %v590 = vadd.f32 0.0, %v589
  %v591 = vpop.f32.mrb[0].mxu0
  %v592 = vpop.f32.mrb[0].mxu0
  %v593 = vadd.f32 0.0, %v592
  %v594 = vpop.f32.mrb[0].mxu0
  %595 = vmatprep.mubr.bf16.mxu0 0
  %596 = vmatmul.mubr.bf16.gmra.mrb[0].mxu0 %v379
  %v597 = vpop.f32.mrb[0].mxu0
  %v598 = vadd.f32 0.0, %v597
  %v599 = vpop.f32.mrb[0].mxu0
  %v600 = vpop.f32.mrb[0].mxu0
  %v601 = vadd.f32 0.0, %v600
  %v602 = vpop.f32.mrb[0].mxu0
  %603 = vmatprep.mubr.bf16.mxu0 0
  %604 = vmatmul.mubr.bf16.gmra.mrb[0].mxu0 %v382
  %v605 = vpop.f32.mrb[0].mxu0
  %v606 = vadd.f32 0.0, %v605
  %v607 = vpop.f32.mrb[0].mxu0
  %v608 = vpop.f32.mrb[0].mxu0
  %v609 = vadd.f32 0.0, %v608
  %v610 = vpop.f32.mrb[0].mxu0
  %611 = vmatprep.mubr.bf16.mxu0 0
  %612 = vmatmul.mubr.bf16.gmra.mrb[0].mxu0 %v385
  %v613 = vpop.f32.mrb[0].mxu0
  %v614 = vadd.f32 0.0, %v613
  %v615 = vpop.f32.mrb[0].mxu0
  %v616 = vpop.f32.mrb[0].mxu0
  %v617 = vadd.f32 0.0, %v616
  %v618 = vpop.f32.mrb[0].mxu0
  %619 = vmatprep.mubr.bf16.mxu0 0
  %620 = vmatmul.mubr.bf16.gmra.mrb[0].mxu0 %v388
  %v621 = vpop.f32.mrb[0].mxu0
  %v622 = vadd.f32 0.0, %v621
  %v623 = vpop.f32.mrb[0].mxu0
  %v624 = vpop.f32.mrb[0].mxu0
  %v625 = vadd.f32 0.0, %v624
  %v626 = vpop.f32.mrb[0].mxu0
  %627 = vmatprep.mubr.bf16.mxu0 0
  %628 = vmatmul.mubr.bf16.gmra.mrb[0].mxu0 %v391
  %v629 = vpop.f32.mrb[0].mxu0
  %v630 = vadd.f32 0.0, %v629
  %v631 = vpop.f32.mrb[0].mxu0
  %v632 = vpop.f32.mrb[0].mxu0
  %v633 = vadd.f32 0.0, %v632
  %v634 = vpop.f32.mrb[0].mxu0
  %635 = vmatprep.mubr.bf16.mxu0 0
  %636 = vmatmul.mubr.bf16.gmra.mrb[0].mxu0 %v394
  %v637 = vpop.f32.mrb[0].mxu0
  %v638 = vadd.f32 0.0, %v637
  %v639 = vpop.f32.mrb[0].mxu0
  %v640 = vpop.f32.mrb[0].mxu0
  %v641 = vadd.f32 0.0, %v640
  %v642 = vpop.f32.mrb[0].mxu0
  %643 = vmatprep.mubr.bf16.mxu0 0
  %644 = vmatmul.mubr.bf16.gmra.mrb[0].mxu0 %v397
  %v645 = vpop.f32.mrb[0].mxu0
  %v646 = vadd.f32 0.0, %v645
  %v647 = vpop.f32.mrb[0].mxu0
  %v648 = vpop.f32.mrb[0].mxu0
  %v649 = vadd.f32 0.0, %v648
  %v650 = vpop.f32.mrb[0].mxu0
  %651 = vmatprep.mubr.bf16.mxu0 0
  %652 = vmatmul.mubr.bf16.gmra.mrb[0].mxu0 %v400
  %v653 = vpop.f32.mrb[0].mxu0
  %v654 = vadd.f32 0.0, %v653
  %v655 = vpop.f32.mrb[0].mxu0
  %v656 = vpop.f32.mrb[0].mxu0
  %v657 = vadd.f32 0.0, %v656
  %v658 = vpop.f32.mrb[0].mxu0
  %659 = vmatprep.mubr.bf16.mxu0 0
  %660 = vmatmul.mubr.bf16.gmra.mrb[0].mxu0 %v403
  %v661 = vpop.f32.mrb[0].mxu0
  %v662 = vadd.f32 0.0, %v661
  %v663 = vpop.f32.mrb[0].mxu0
  %v664 = vpop.f32.mrb[0].mxu0
  %v665 = vadd.f32 0.0, %v664
  %v666 = vpop.f32.mrb[0].mxu0
  %667 = vmatprep.mubr.bf16.mxu0 0
  %668 = vmatmul.mubr.bf16.gmra.mrb[0].mxu0 %v406
  %v669 = vpop.f32.mrb[0].mxu0
  %v670 = vadd.f32 0.0, %v669
  %v671 = vpop.f32.mrb[0].mxu0
  %v672 = vpop.f32.mrb[0].mxu0
  %v673 = vadd.f32 0.0, %v672
  %v674 = vpop.f32.mrb[0].mxu0
  %675 = vmatprep.mubr.bf16.mxu0 0
  %676 = vmatmul.mubr.bf16.gmra.mrb[0].mxu0 %v409
  %v677 = vpop.f32.mrb[0].mxu0
  %v678 = vadd.f32 0.0, %v677
  %v679 = vpop.f32.mrb[0].mxu0
  %v680 = vpop.f32.mrb[0].mxu0
  %v681 = vadd.f32 0.0, %v680
  %v682 = vpop.f32.mrb[0].mxu0
  %683 = vmatprep.mubr.bf16.mxu0 0
  %684 = vmatmul.mubr.bf16.gmra.mrb[0].mxu0 %v412
  %v685 = vpop.f32.mrb[0].mxu0
  %v686 = vadd.f32 0.0, %v685
  %v687 = vpop.f32.mrb[0].mxu0
  %v688 = vpop.f32.mrb[0].mxu0
  %v689 = vadd.f32 0.0, %v688
  %v690 = vpop.f32.mrb[0].mxu0
  %691 = vmatprep.mubr.bf16.mxu0 0
  %692 = vmatmul.mubr.bf16.gmra.mrb[0].mxu0 %v415
  %v693 = vpop.f32.mrb[0].mxu0
  %v694 = vadd.f32 0.0, %v693
  %v695 = vpop.f32.mrb[0].mxu0
  %v696 = vpop.f32.mrb[0].mxu0
  %v697 = vadd.f32 0.0, %v696
  %v698 = vpop.f32.mrb[0].mxu0
  %699 = vmatprep.mubr.bf16.mxu0 0
  %700 = vmatmul.mubr.bf16.gmra.mrb[0].mxu0 %v418
  %v701 = vpop.f32.mrb[0].mxu0
  %v702 = vadd.f32 0.0, %v701
  %v703 = vpop.f32.mrb[0].mxu0
  %v704 = vpop.f32.mrb[0].mxu0
  %v705 = vadd.f32 0.0, %v704
  %v706 = vpop.f32.mrb[0].mxu0
  %707 = vmatprep.mubr.bf16.mxu0 0
  %708 = vmatmul.mubr.bf16.gmra.mrb[0].mxu0 %v421
  %v709 = vpop.f32.mrb[0].mxu0
  %v710 = vadd.f32 0.0, %v709
  %v711 = vpop.f32.mrb[0].mxu0
  %v712 = vpop.f32.mrb[0].mxu0
  %v713 = vadd.f32 0.0, %v712
  %v714 = vpop.f32.mrb[0].mxu0
  %715 = vdwg.mxu0
  %v780 = vunpack.c.l.b16 %v36
  %v781 = vunpack.c.l.b16 %v37
  %v782 = vunpack.c.l.b16 %v38
  %v783 = vunpack.c.l.b16 %v39
  %v784 = vunpack.c.l.b16 %v40
  %v785 = vunpack.c.l.b16 %v41
  %v786 = vunpack.c.l.b16 %v42
  %v787 = vunpack.c.l.b16 %v43
  %v788 = vunpack.c.l.b16 %v44
  %v789 = vunpack.c.l.b16 %v45
  %v790 = vunpack.c.l.b16 %v46
  %v791 = vunpack.c.l.b16 %v47
  %v792 = vunpack.c.l.b16 %v48
  %v793 = vunpack.c.l.b16 %v49
  %v794 = vunpack.c.l.b16 %v50
  %v795 = vunpack.c.l.b16 %v51
  %v796 = vunpack.c.l.b16 %v52
  %v797 = vunpack.c.l.b16 %v53
  %v798 = vunpack.c.l.b16 %v54
  %v799 = vunpack.c.l.b16 %v55
  %v800 = vunpack.c.l.b16 %v56
  %v801 = vunpack.c.l.b16 %v57
  %v802 = vunpack.c.l.b16 %v58
  %v803 = vunpack.c.l.b16 %v59
  %v804 = vunpack.c.l.b16 %v60
  %v805 = vunpack.c.l.b16 %v61
  %v806 = vunpack.c.l.b16 %v62
  %v807 = vunpack.c.l.b16 %v63
  %v808 = vunpack.c.l.b16 %v64
  %v809 = vunpack.c.l.b16 %v65
  %v810 = vunpack.c.l.b16 %v66
  %v811 = vunpack.c.l.b16 %v67
  %v812 = vunpack.c.l.b16 %v68
  %v813 = vunpack.c.l.b16 %v69
  %v814 = vunpack.c.l.b16 %v70
  %v815 = vunpack.c.l.b16 %v71
  %v816 = vunpack.c.l.b16 %v72
  %v817 = vunpack.c.l.b16 %v73
  %v818 = vunpack.c.l.b16 %v74
  %v819 = vunpack.c.l.b16 %v75
  %v820 = vunpack.c.l.b16 %v76
  %v821 = vunpack.c.l.b16 %v77
  %v822 = vunpack.c.l.b16 %v78
  %v823 = vunpack.c.l.b16 %v79
  %v824 = vunpack.c.l.b16 %v80
  %v825 = vunpack.c.l.b16 %v81
  %v826 = vunpack.c.l.b16 %v82
  %v827 = vunpack.c.l.b16 %v83
  %v828 = vunpack.c.l.b16 %v84
  %v829 = vunpack.c.l.b16 %v85
  %v830 = vunpack.c.l.b16 %v86
  %v831 = vunpack.c.l.b16 %v87
  %v832 = vunpack.c.l.b16 %v88
  %v833 = vunpack.c.l.b16 %v89
  %v834 = vunpack.c.l.b16 %v90
  %v835 = vunpack.c.l.b16 %v91
  %v836 = vunpack.c.l.b16 %v92
  %v837 = vunpack.c.l.b16 %v93
  %v838 = vunpack.c.l.b16 %v94
  %v839 = vunpack.c.l.b16 %v95
  %v840 = vunpack.c.l.b16 %v96
  %v841 = vunpack.c.l.b16 %v97
  %v842 = vunpack.c.l.b16 %v98
  %v843 = vunpack.c.l.b16 %v99
  %v844 = vpack.c.b16 %v781, %v780
  %v845 = vpack.c.b16 %v783, %v782
  %v846 = vpack.c.b16 %v785, %v784
  %v847 = vpack.c.b16 %v787, %v786
  %v848 = vpack.c.b16 %v789, %v788
  %v849 = vpack.c.b16 %v791, %v790
  %v850 = vpack.c.b16 %v793, %v792
  %v851 = vpack.c.b16 %v795, %v794
  %v852 = vpack.c.b16 %v797, %v796
  %v853 = vpack.c.b16 %v799, %v798
  %v854 = vpack.c.b16 %v801, %v800
  %v855 = vpack.c.b16 %v803, %v802
  %v856 = vpack.c.b16 %v805, %v804
  %v857 = vpack.c.b16 %v807, %v806
  %v858 = vpack.c.b16 %v809, %v808
  %v859 = vpack.c.b16 %v811, %v810
  %v860 = vpack.c.b16 %v813, %v812
  %v861 = vpack.c.b16 %v815, %v814
  %v862 = vpack.c.b16 %v817, %v816
  %v863 = vpack.c.b16 %v819, %v818
  %v864 = vpack.c.b16 %v821, %v820
  %v865 = vpack.c.b16 %v823, %v822
  %v866 = vpack.c.b16 %v825, %v824
  %v867 = vpack.c.b16 %v827, %v826
  %v868 = vpack.c.b16 %v829, %v828
  %v869 = vpack.c.b16 %v831, %v830
  %v870 = vpack.c.b16 %v833, %v832
  %v871 = vpack.c.b16 %v835, %v834
  %v872 = vpack.c.b16 %v837, %v836
  %v873 = vpack.c.b16 %v839, %v838
  %v874 = vpack.c.b16 %v841, %v840
  %v875 = vpack.c.b16 %v843, %v842
  %v877 = vsel %vm326, %v844, 0
  %v880 = vsel %vm326, %v845, 0
  %v883 = vsel %vm326, %v846, 0
  %v886 = vsel %vm326, %v847, 0
  %v889 = vsel %vm326, %v848, 0
  %v892 = vsel %vm326, %v849, 0
  %v895 = vsel %vm326, %v850, 0
  %v898 = vsel %vm326, %v851, 0
  %v901 = vsel %vm326, %v852, 0
  %v904 = vsel %vm326, %v853, 0
  %v907 = vsel %vm326, %v854, 0
  %v910 = vsel %vm326, %v855, 0
  %v913 = vsel %vm326, %v856, 0
  %v916 = vsel %vm326, %v857, 0
  %v919 = vsel %vm326, %v858, 0
  %v922 = vsel %vm326, %v859, 0
  %v925 = vsel %vm326, %v860, 0
  %v928 = vsel %vm326, %v861, 0
  %v931 = vsel %vm326, %v862, 0
  %v934 = vsel %vm326, %v863, 0
  %v937 = vsel %vm326, %v864, 0
  %v940 = vsel %vm326, %v865, 0
  %v943 = vsel %vm326, %v866, 0
  %v946 = vsel %vm326, %v867, 0
  %v949 = vsel %vm326, %v868, 0
  %v952 = vsel %vm326, %v869, 0
  %v955 = vsel %vm326, %v870, 0
  %v958 = vsel %vm326, %v871, 0
  %v961 = vsel %vm326, %v872, 0
  %v964 = vsel %vm326, %v873, 0
  %v967 = vsel %vm326, %v874, 0
  %v970 = vsel %vm326, %v875, 0
  %v973 = vsel %vm423, %v164, 0
  %975 = vmatprep.subr.bf16.mxu0 0
  %976 = vmatpush1.bf16.msra.mxu0 %v973
  %977 = vmatprep.subr.bf16.mxu0 0
  %978 = vmatpush1.bf16.msra.mxu0 0
  %979 = vmatprep.subr.bf16.mxu0 0
  %980 = vmatpush1.bf16.msra.mxu0 0
  %981 = vmatprep.subr.bf16.mxu0 0
  %982 = vmatpush1.bf16.msra.mxu0 0
  %983 = vmatprep.subr.bf16.mxu0 0
  %984 = vmatpush1.bf16.msra.mxu0 0
  %985 = vmatprep.subr.bf16.mxu0 0
  %986 = vmatpush1.bf16.msra.mxu0 0
  %987 = vmatprep.subr.bf16.mxu0 0
  %988 = vmatpush1.bf16.msra.mxu0 0
  %989 = vmatprep.subr.bf16.mxu0 0
  %990 = vmatpush1.bf16.msra.mxu0 0
  %991 = vmatprep.subr.bf16.mxu0 0
  %992 = vmatpush1.bf16.msra.mxu0 0
  %993 = vmatprep.subr.bf16.mxu0 0
  %994 = vmatpush1.bf16.msra.mxu0 0
  %995 = vmatprep.subr.bf16.mxu0 0
  %996 = vmatpush1.bf16.msra.mxu0 0
  %997 = vmatprep.subr.bf16.mxu0 0
  %998 = vmatpush1.bf16.msra.mxu0 0
  %999 = vmatprep.subr.bf16.mxu0 0
  %1000 = vmatpush1.bf16.msra.mxu0 0
  %1001 = vmatprep.subr.bf16.mxu0 0
  %1002 = vmatpush1.bf16.msra.mxu0 0
  %1003 = vmatprep.subr.bf16.mxu0 0
  %1004 = vmatpush1.bf16.msra.mxu0 0
  %1005 = vmatprep.subr.bf16.mxu0 0
  %1006 = vmatpush1.bf16.msra.mxu0 0
  %1007 = vmatprep.mubr.bf16.mxu0 0
  %1008 = vmatmul.mubr.bf16.gmra.mrb[0].mxu0 %v877
  %v1009 = vpop.f32.mrb[0].mxu0
  %v1010 = vadd.f32 %v462, %v1009
  %v1011 = vpop.f32.mrb[0].mxu0
  %v1012 = vpop.f32.mrb[0].mxu0
  %v1013 = vadd.f32 %v465, %v1012
  %v1014 = vpop.f32.mrb[0].mxu0
  %1015 = vmatprep.mubr.bf16.mxu0 0
  %1016 = vmatmul.mubr.bf16.gmra.mrb[0].mxu0 %v880
  %v1017 = vpop.f32.mrb[0].mxu0
  %v1018 = vadd.f32 %v470, %v1017
  %v1019 = vpop.f32.mrb[0].mxu0
  %v1020 = vpop.f32.mrb[0].mxu0
  %v1021 = vadd.f32 %v473, %v1020
  %v1022 = vpop.f32.mrb[0].mxu0
  %1023 = vmatprep.mubr.bf16.mxu0 0
  %1024 = vmatmul.mubr.bf16.gmra.mrb[0].mxu0 %v883
  %v1025 = vpop.f32.mrb[0].mxu0
  %v1026 = vadd.f32 %v478, %v1025
  %v1027 = vpop.f32.mrb[0].mxu0
  %v1028 = vpop.f32.mrb[0].mxu0
  %v1029 = vadd.f32 %v481, %v1028
  %v1030 = vpop.f32.mrb[0].mxu0
  %1031 = vmatprep.mubr.bf16.mxu0 0
  %1032 = vmatmul.mubr.bf16.gmra.mrb[0].mxu0 %v886
  %v1033 = vpop.f32.mrb[0].mxu0
  %v1034 = vadd.f32 %v486, %v1033
  %v1035 = vpop.f32.mrb[0].mxu0
  %v1036 = vpop.f32.mrb[0].mxu0
  %v1037 = vadd.f32 %v489, %v1036
  %v1038 = vpop.f32.mrb[0].mxu0
  %1039 = vmatprep.mubr.bf16.mxu0 0
  %1040 = vmatmul.mubr.bf16.gmra.mrb[0].mxu0 %v889
  %v1041 = vpop.f32.mrb[0].mxu0
  %v1042 = vadd.f32 %v494, %v1041
  %v1043 = vpop.f32.mrb[0].mxu0
  %v1044 = vpop.f32.mrb[0].mxu0
  %v1045 = vadd.f32 %v497, %v1044
  %v1046 = vpop.f32.mrb[0].mxu0
  %1047 = vmatprep.mubr.bf16.mxu0 0
  %1048 = vmatmul.mubr.bf16.gmra.mrb[0].mxu0 %v892
  %v1049 = vpop.f32.mrb[0].mxu0
  %v1050 = vadd.f32 %v502, %v1049
  %v1051 = vpop.f32.mrb[0].mxu0
  %v1052 = vpop.f32.mrb[0].mxu0
  %v1053 = vadd.f32 %v505, %v1052
  %v1054 = vpop.f32.mrb[0].mxu0
  %1055 = vmatprep.mubr.bf16.mxu0 0
  %1056 = vmatmul.mubr.bf16.gmra.mrb[0].mxu0 %v895
  %v1057 = vpop.f32.mrb[0].mxu0
  %v1058 = vadd.f32 %v510, %v1057
  %v1059 = vpop.f32.mrb[0].mxu0
  %v1060 = vpop.f32.mrb[0].mxu0
  %v1061 = vadd.f32 %v513, %v1060
  %v1062 = vpop.f32.mrb[0].mxu0
  %1063 = vmatprep.mubr.bf16.mxu0 0
  %1064 = vmatmul.mubr.bf16.gmra.mrb[0].mxu0 %v898
  %v1065 = vpop.f32.mrb[0].mxu0
  %v1066 = vadd.f32 %v518, %v1065
  %v1067 = vpop.f32.mrb[0].mxu0
  %v1068 = vpop.f32.mrb[0].mxu0
  %v1069 = vadd.f32 %v521, %v1068
  %v1070 = vpop.f32.mrb[0].mxu0
  %1071 = vmatprep.mubr.bf16.mxu0 0
  %1072 = vmatmul.mubr.bf16.gmra.mrb[0].mxu0 %v901
  %v1073 = vpop.f32.mrb[0].mxu0
  %v1074 = vadd.f32 %v526, %v1073
  %v1075 = vpop.f32.mrb[0].mxu0
  %v1076 = vpop.f32.mrb[0].mxu0
  %v1077 = vadd.f32 %v529, %v1076
  %v1078 = vpop.f32.mrb[0].mxu0
  %1079 = vmatprep.mubr.bf16.mxu0 0
  %1080 = vmatmul.mubr.bf16.gmra.mrb[0].mxu0 %v904
  %v1081 = vpop.f32.mrb[0].mxu0
  %v1082 = vadd.f32 %v534, %v1081
  %v1083 = vpop.f32.mrb[0].mxu0
  %v1084 = vpop.f32.mrb[0].mxu0
  %v1085 = vadd.f32 %v537, %v1084
  %v1086 = vpop.f32.mrb[0].mxu0
  %1087 = vmatprep.mubr.bf16.mxu0 0
  %1088 = vmatmul.mubr.bf16.gmra.mrb[0].mxu0 %v907
  %v1089 = vpop.f32.mrb[0].mxu0
  %v1090 = vadd.f32 %v542, %v1089
  %v1091 = vpop.f32.mrb[0].mxu0
  %v1092 = vpop.f32.mrb[0].mxu0
  %v1093 = vadd.f32 %v545, %v1092
  %v1094 = vpop.f32.mrb[0].mxu0
  %1095 = vmatprep.mubr.bf16.mxu0 0
  %1096 = vmatmul.mubr.bf16.gmra.mrb[0].mxu0 %v910
  %v1097 = vpop.f32.mrb[0].mxu0
  %v1098 = vadd.f32 %v550, %v1097
  %v1099 = vpop.f32.mrb[0].mxu0
  %v1100 = vpop.f32.mrb[0].mxu0
  %v1101 = vadd.f32 %v553, %v1100
  %v1102 = vpop.f32.mrb[0].mxu0
  %1103 = vmatprep.mubr.bf16.mxu0 0
  %1104 = vmatmul.mubr.bf16.gmra.mrb[0].mxu0 %v913
  %v1105 = vpop.f32.mrb[0].mxu0
  %v1106 = vadd.f32 %v558, %v1105
  %v1107 = vpop.f32.mrb[0].mxu0
  %v1108 = vpop.f32.mrb[0].mxu0
  %v1109 = vadd.f32 %v561, %v1108
  %v1110 = vpop.f32.mrb[0].mxu0
  %1111 = vmatprep.mubr.bf16.mxu0 0
  %1112 = vmatmul.mubr.bf16.gmra.mrb[0].mxu0 %v916
  %v1113 = vpop.f32.mrb[0].mxu0
  %v1114 = vadd.f32 %v566, %v1113
  %v1115 = vpop.f32.mrb[0].mxu0
  %v1116 = vpop.f32.mrb[0].mxu0
  %v1117 = vadd.f32 %v569, %v1116
  %v1118 = vpop.f32.mrb[0].mxu0
  %1119 = vmatprep.mubr.bf16.mxu0 0
  %1120 = vmatmul.mubr.bf16.gmra.mrb[0].mxu0 %v919
  %v1121 = vpop.f32.mrb[0].mxu0
  %v1122 = vadd.f32 %v574, %v1121
  %v1123 = vpop.f32.mrb[0].mxu0
  %v1124 = vpop.f32.mrb[0].mxu0
  %v1125 = vadd.f32 %v577, %v1124
  %v1126 = vpop.f32.mrb[0].mxu0
  %1127 = vmatprep.mubr.bf16.mxu0 0
  %1128 = vmatmul.mubr.bf16.gmra.mrb[0].mxu0 %v922
  %v1129 = vpop.f32.mrb[0].mxu0
  %v1130 = vadd.f32 %v582, %v1129
  %v1131 = vpop.f32.mrb[0].mxu0
  %v1132 = vpop.f32.mrb[0].mxu0
  %v1133 = vadd.f32 %v585, %v1132
  %v1134 = vpop.f32.mrb[0].mxu0
  %1135 = vmatprep.mubr.bf16.mxu0 0
  %1136 = vmatmul.mubr.bf16.gmra.mrb[0].mxu0 %v925
  %v1137 = vpop.f32.mrb[0].mxu0
  %v1138 = vadd.f32 %v590, %v1137
  %v1139 = vpop.f32.mrb[0].mxu0
  %v1140 = vpop.f32.mrb[0].mxu0
  %v1141 = vadd.f32 %v593, %v1140
  %v1142 = vpop.f32.mrb[0].mxu0
  %1143 = vmatprep.mubr.bf16.mxu0 0
  %1144 = vmatmul.mubr.bf16.gmra.mrb[0].mxu0 %v928
  %v1145 = vpop.f32.mrb[0].mxu0
  %v1146 = vadd.f32 %v598, %v1145
  %v1147 = vpop.f32.mrb[0].mxu0
  %v1148 = vpop.f32.mrb[0].mxu0
  %v1149 = vadd.f32 %v601, %v1148
  %v1150 = vpop.f32.mrb[0].mxu0
  %1151 = vmatprep.mubr.bf16.mxu0 0
  %1152 = vmatmul.mubr.bf16.gmra.mrb[0].mxu0 %v931
  %v1153 = vpop.f32.mrb[0].mxu0
  %v1154 = vadd.f32 %v606, %v1153
  %v1155 = vpop.f32.mrb[0].mxu0
  %v1156 = vpop.f32.mrb[0].mxu0
  %v1157 = vadd.f32 %v609, %v1156
  %v1158 = vpop.f32.mrb[0].mxu0
  %1159 = vmatprep.mubr.bf16.mxu0 0
  %1160 = vmatmul.mubr.bf16.gmra.mrb[0].mxu0 %v934
  %v1161 = vpop.f32.mrb[0].mxu0
  %v1162 = vadd.f32 %v614, %v1161
  %v1163 = vpop.f32.mrb[0].mxu0
  %v1164 = vpop.f32.mrb[0].mxu0
  %v1165 = vadd.f32 %v617, %v1164
  %v1166 = vpop.f32.mrb[0].mxu0
  %1167 = vmatprep.mubr.bf16.mxu0 0
  %1168 = vmatmul.mubr.bf16.gmra.mrb[0].mxu0 %v937
  %v1169 = vpop.f32.mrb[0].mxu0
  %v1170 = vadd.f32 %v622, %v1169
  %v1171 = vpop.f32.mrb[0].mxu0
  %v1172 = vpop.f32.mrb[0].mxu0
  %v1173 = vadd.f32 %v625, %v1172
  %v1174 = vpop.f32.mrb[0].mxu0
  %1175 = vmatprep.mubr.bf16.mxu0 0
  %1176 = vmatmul.mubr.bf16.gmra.mrb[0].mxu0 %v940
  %v1177 = vpop.f32.mrb[0].mxu0
  %v1178 = vadd.f32 %v630, %v1177
  %v1179 = vpop.f32.mrb[0].mxu0
  %v1180 = vpop.f32.mrb[0].mxu0
  %v1181 = vadd.f32 %v633, %v1180
  %v1182 = vpop.f32.mrb[0].mxu0
  %1183 = vmatprep.mubr.bf16.mxu0 0
  %1184 = vmatmul.mubr.bf16.gmra.mrb[0].mxu0 %v943
  %v1185 = vpop.f32.mrb[0].mxu0
  %v1186 = vadd.f32 %v638, %v1185
  %v1187 = vpop.f32.mrb[0].mxu0
  %v1188 = vpop.f32.mrb[0].mxu0
  %v1189 = vadd.f32 %v641, %v1188
  %v1190 = vpop.f32.mrb[0].mxu0
  %1191 = vmatprep.mubr.bf16.mxu0 0
  %1192 = vmatmul.mubr.bf16.gmra.mrb[0].mxu0 %v946
  %v1193 = vpop.f32.mrb[0].mxu0
  %v1194 = vadd.f32 %v646, %v1193
  %v1195 = vpop.f32.mrb[0].mxu0
  %v1196 = vpop.f32.mrb[0].mxu0
  %v1197 = vadd.f32 %v649, %v1196
  %v1198 = vpop.f32.mrb[0].mxu0
  %1199 = vmatprep.mubr.bf16.mxu0 0
  %1200 = vmatmul.mubr.bf16.gmra.mrb[0].mxu0 %v949
  %v1201 = vpop.f32.mrb[0].mxu0
  %v1202 = vadd.f32 %v654, %v1201
  %v1203 = vpop.f32.mrb[0].mxu0
  %v1204 = vpop.f32.mrb[0].mxu0
  %v1205 = vadd.f32 %v657, %v1204
  %v1206 = vpop.f32.mrb[0].mxu0
  %1207 = vmatprep.mubr.bf16.mxu0 0
  %1208 = vmatmul.mubr.bf16.gmra.mrb[0].mxu0 %v952
  %v1209 = vpop.f32.mrb[0].mxu0
  %v1210 = vadd.f32 %v662, %v1209
  %v1211 = vpop.f32.mrb[0].mxu0
  %v1212 = vpop.f32.mrb[0].mxu0
  %v1213 = vadd.f32 %v665, %v1212
  %v1214 = vpop.f32.mrb[0].mxu0
  %1215 = vmatprep.mubr.bf16.mxu0 0
  %1216 = vmatmul.mubr.bf16.gmra.mrb[0].mxu0 %v955
  %v1217 = vpop.f32.mrb[0].mxu0
  %v1218 = vadd.f32 %v670, %v1217
  %v1219 = vpop.f32.mrb[0].mxu0
  %v1220 = vpop.f32.mrb[0].mxu0
  %v1221 = vadd.f32 %v673, %v1220
  %v1222 = vpop.f32.mrb[0].mxu0
  %1223 = vmatprep.mubr.bf16.mxu0 0
  %1224 = vmatmul.mubr.bf16.gmra.mrb[0].mxu0 %v958
  %v1225 = vpop.f32.mrb[0].mxu0
  %v1226 = vadd.f32 %v678, %v1225
  %v1227 = vpop.f32.mrb[0].mxu0
  %v1228 = vpop.f32.mrb[0].mxu0
  %v1229 = vadd.f32 %v681, %v1228
  %v1230 = vpop.f32.mrb[0].mxu0
  %1231 = vmatprep.mubr.bf16.mxu0 0
  %1232 = vmatmul.mubr.bf16.gmra.mrb[0].mxu0 %v961
  %v1233 = vpop.f32.mrb[0].mxu0
  %v1234 = vadd.f32 %v686, %v1233
  %v1235 = vpop.f32.mrb[0].mxu0
  %v1236 = vpop.f32.mrb[0].mxu0
  %v1237 = vadd.f32 %v689, %v1236
  %v1238 = vpop.f32.mrb[0].mxu0
  %1239 = vmatprep.mubr.bf16.mxu0 0
  %1240 = vmatmul.mubr.bf16.gmra.mrb[0].mxu0 %v964
  %v1241 = vpop.f32.mrb[0].mxu0
  %v1242 = vadd.f32 %v694, %v1241
  %v1243 = vpop.f32.mrb[0].mxu0
  %v1244 = vpop.f32.mrb[0].mxu0
  %v1245 = vadd.f32 %v697, %v1244
  %v1246 = vpop.f32.mrb[0].mxu0
  %1247 = vmatprep.mubr.bf16.mxu0 0
  %1248 = vmatmul.mubr.bf16.gmra.mrb[0].mxu0 %v967
  %v1249 = vpop.f32.mrb[0].mxu0
  %v1250 = vadd.f32 %v702, %v1249
  %v1251 = vpop.f32.mrb[0].mxu0
  %v1252 = vpop.f32.mrb[0].mxu0
  %v1253 = vadd.f32 %v705, %v1252
  %v1254 = vpop.f32.mrb[0].mxu0
  %1255 = vmatprep.mubr.bf16.mxu0 0
  %1256 = vmatmul.mubr.bf16.gmra.mrb[0].mxu0 %v970
  %v1257 = vpop.f32.mrb[0].mxu0
  %v1258 = vadd.f32 %v710, %v1257
  %v1259 = vpop.f32.mrb[0].mxu0
  %v1260 = vpop.f32.mrb[0].mxu0
  %v1261 = vadd.f32 %v713, %v1260
  %v1262 = vpop.f32.mrb[0].mxu0
  %1263 = vdwg.mxu0
  %v1264 = vld [vmem:[%s6] sm:$0x1]
  %v1266 = vlaneseq
  %v1267 = vshrl.u32 %v1266, 7
  %v1268 = vsub.s32 0, %v1267
  %v1269 = vrot.slane %v1264, %v1268
  %v1271 = vadd.f32 %v1010, %v1269
  %v1272 = vadd.f32 %v1013, %v1269
  %v1273 = vadd.f32 %v1018, %v1269
  %v1274 = vadd.f32 %v1021, %v1269
  %v1275 = vadd.f32 %v1026, %v1269
  %v1276 = vadd.f32 %v1029, %v1269
  %v1277 = vadd.f32 %v1034, %v1269
  %v1278 = vadd.f32 %v1037, %v1269
  %v1279 = vadd.f32 %v1042, %v1269
  %v1280 = vadd.f32 %v1045, %v1269
  %v1281 = vadd.f32 %v1050, %v1269
  %v1282 = vadd.f32 %v1053, %v1269
  %v1283 = vadd.f32 %v1058, %v1269
  %v1284 = vadd.f32 %v1061, %v1269
  %v1285 = vadd.f32 %v1066, %v1269
  %v1286 = vadd.f32 %v1069, %v1269
  %v1287 = vadd.f32 %v1074, %v1269
  %v1288 = vadd.f32 %v1077, %v1269
  %v1289 = vadd.f32 %v1082, %v1269
  %v1290 = vadd.f32 %v1085, %v1269
  %v1291 = vadd.f32 %v1090, %v1269
  %v1292 = vadd.f32 %v1093, %v1269
  %v1293 = vadd.f32 %v1098, %v1269
  %v1294 = vadd.f32 %v1101, %v1269
  %v1295 = vadd.f32 %v1106, %v1269
  %v1296 = vadd.f32 %v1109, %v1269
  %v1297 = vadd.f32 %v1114, %v1269
  %v1298 = vadd.f32 %v1117, %v1269
  %v1299 = vadd.f32 %v1122, %v1269
  %v1300 = vadd.f32 %v1125, %v1269
  %v1301 = vadd.f32 %v1130, %v1269
  %v1302 = vadd.f32 %v1133, %v1269
  %v1303 = vadd.f32 %v1138, %v1269
  %v1304 = vadd.f32 %v1141, %v1269
  %v1305 = vadd.f32 %v1146, %v1269
  %v1306 = vadd.f32 %v1149, %v1269
  %v1307 = vadd.f32 %v1154, %v1269
  %v1308 = vadd.f32 %v1157, %v1269
  %v1309 = vadd.f32 %v1162, %v1269
  %v1310 = vadd.f32 %v1165, %v1269
  %v1311 = vadd.f32 %v1170, %v1269
  %v1312 = vadd.f32 %v1173, %v1269
  %v1313 = vadd.f32 %v1178, %v1269
  %v1314 = vadd.f32 %v1181, %v1269
  %v1315 = vadd.f32 %v1186, %v1269
  %v1316 = vadd.f32 %v1189, %v1269
  %v1317 = vadd.f32 %v1194, %v1269
  %v1318 = vadd.f32 %v1197, %v1269
  %v1319 = vadd.f32 %v1202, %v1269
  %v1320 = vadd.f32 %v1205, %v1269
  %v1321 = vadd.f32 %v1210, %v1269
  %v1322 = vadd.f32 %v1213, %v1269
  %v1323 = vadd.f32 %v1218, %v1269
  %v1324 = vadd.f32 %v1221, %v1269
  %v1325 = vadd.f32 %v1226, %v1269
  %v1326 = vadd.f32 %v1229, %v1269
  %v1327 = vadd.f32 %v1234, %v1269
  %v1328 = vadd.f32 %v1237, %v1269
  %v1329 = vadd.f32 %v1242, %v1269
  %v1330 = vadd.f32 %v1245, %v1269
  %v1331 = vadd.f32 %v1250, %v1269
  %v1332 = vadd.f32 %v1253, %v1269
  %v1333 = vadd.f32 %v1258, %v1269
  %v1334 = vadd.f32 %v1261, %v1269
  %v1335 = vpack.c.bf16 %v1272, %v1271
  %v1336 = vpack.c.bf16 %v1274, %v1273
  %v1337 = vpack.c.bf16 %v1276, %v1275
  %v1338 = vpack.c.bf16 %v1278, %v1277
  %v1339 = vpack.c.bf16 %v1280, %v1279
  %v1340 = vpack.c.bf16 %v1282, %v1281
  %v1341 = vpack.c.bf16 %v1284, %v1283
  %v1342 = vpack.c.bf16 %v1286, %v1285
  %v1343 = vpack.c.bf16 %v1288, %v1287
  %v1344 = vpack.c.bf16 %v1290, %v1289
  %v1345 = vpack.c.bf16 %v1292, %v1291
  %v1346 = vpack.c.bf16 %v1294, %v1293
  %v1347 = vpack.c.bf16 %v1296, %v1295
  %v1348 = vpack.c.bf16 %v1298, %v1297
  %v1349 = vpack.c.bf16 %v1300, %v1299
  %v1350 = vpack.c.bf16 %v1302, %v1301
  %v1351 = vpack.c.bf16 %v1304, %v1303
  %v1352 = vpack.c.bf16 %v1306, %v1305
  %v1353 = vpack.c.bf16 %v1308, %v1307
  %v1354 = vpack.c.bf16 %v1310, %v1309
  %v1355 = vpack.c.bf16 %v1312, %v1311
  %v1356 = vpack.c.bf16 %v1314, %v1313
  %v1357 = vpack.c.bf16 %v1316, %v1315
  %v1358 = vpack.c.bf16 %v1318, %v1317
  %v1359 = vpack.c.bf16 %v1320, %v1319
  %v1360 = vpack.c.bf16 %v1322, %v1321
  %v1361 = vpack.c.bf16 %v1324, %v1323
  %v1362 = vpack.c.bf16 %v1326, %v1325
  %v1363 = vpack.c.bf16 %v1328, %v1327
  %v1364 = vpack.c.bf16 %v1330, %v1329
  %v1365 = vpack.c.bf16 %v1332, %v1331
  %v1366 = vpack.c.bf16 %v1334, %v1333
  %v1399 = vunpack.c.l.b16 %v1335
  %v1400 = vunpack.c.h.b16 %v1335
  %v1401 = vunpack.c.l.b16 %v1336
  %v1402 = vunpack.c.h.b16 %v1336
  %v1403 = vunpack.c.l.b16 %v1337
  %v1404 = vunpack.c.h.b16 %v1337
  %v1405 = vunpack.c.l.b16 %v1338
  %v1406 = vunpack.c.h.b16 %v1338
  %v1407 = vunpack.c.l.b16 %v1339
  %v1408 = vunpack.c.h.b16 %v1339
  %v1409 = vunpack.c.l.b16 %v1340
  %v1410 = vunpack.c.h.b16 %v1340
  %v1411 = vunpack.c.l.b16 %v1341
  %v1412 = vunpack.c.h.b16 %v1341
  %v1413 = vunpack.c.l.b16 %v1342
  %v1414 = vunpack.c.h.b16 %v1342
  %v1415 = vunpack.c.l.b16 %v1343
  %v1416 = vunpack.c.h.b16 %v1343
  %v1417 = vunpack.c.l.b16 %v1344
  %v1418 = vunpack.c.h.b16 %v1344
  %v1419 = vunpack.c.l.b16 %v1345
  %v1420 = vunpack.c.h.b16 %v1345
  %v1421 = vunpack.c.l.b16 %v1346
  %v1422 = vunpack.c.h.b16 %v1346
  %v1423 = vunpack.c.l.b16 %v1347
  %v1424 = vunpack.c.h.b16 %v1347
  %v1425 = vunpack.c.l.b16 %v1348
  %v1426 = vunpack.c.h.b16 %v1348
  %v1427 = vunpack.c.l.b16 %v1349
  %v1428 = vunpack.c.h.b16 %v1349
  %v1429 = vunpack.c.l.b16 %v1350
  %v1430 = vunpack.c.h.b16 %v1350
  %v1431 = vunpack.c.l.b16 %v1351
  %v1432 = vunpack.c.h.b16 %v1351
  %v1433 = vunpack.c.l.b16 %v1352
  %v1434 = vunpack.c.h.b16 %v1352
  %v1435 = vunpack.c.l.b16 %v1353
  %v1436 = vunpack.c.h.b16 %v1353
  %v1437 = vunpack.c.l.b16 %v1354
  %v1438 = vunpack.c.h.b16 %v1354
  %v1439 = vunpack.c.l.b16 %v1355
  %v1440 = vunpack.c.h.b16 %v1355
  %v1441 = vunpack.c.l.b16 %v1356
  %v1442 = vunpack.c.h.b16 %v1356
  %v1443 = vunpack.c.l.b16 %v1357
  %v1444 = vunpack.c.h.b16 %v1357
  %v1445 = vunpack.c.l.b16 %v1358
  %v1446 = vunpack.c.h.b16 %v1358
  %v1447 = vunpack.c.l.b16 %v1359
  %v1448 = vunpack.c.h.b16 %v1359
  %v1449 = vunpack.c.l.b16 %v1360
  %v1450 = vunpack.c.h.b16 %v1360
  %v1451 = vunpack.c.l.b16 %v1361
  %v1452 = vunpack.c.h.b16 %v1361
  %v1453 = vunpack.c.l.b16 %v1362
  %v1454 = vunpack.c.h.b16 %v1362
  %v1455 = vunpack.c.l.b16 %v1363
  %v1456 = vunpack.c.h.b16 %v1363
  %v1457 = vunpack.c.l.b16 %v1364
  %v1458 = vunpack.c.h.b16 %v1364
  %v1459 = vunpack.c.l.b16 %v1365
  %v1460 = vunpack.c.h.b16 %v1365
  %v1461 = vunpack.c.l.b16 %v1366
  %v1462 = vunpack.c.h.b16 %v1366
  %v1463 = vpack.c.b16 %v1399, %v1399
  %v1464 = vpack.c.b16 %v1400, %v1400
  %v1465 = vpack.c.b16 %v1401, %v1401
  %v1466 = vpack.c.b16 %v1402, %v1402
  %v1467 = vpack.c.b16 %v1403, %v1403
  %v1468 = vpack.c.b16 %v1404, %v1404
  %v1469 = vpack.c.b16 %v1405, %v1405
  %v1470 = vpack.c.b16 %v1406, %v1406
  %v1471 = vpack.c.b16 %v1407, %v1407
  %v1472 = vpack.c.b16 %v1408, %v1408
  %v1473 = vpack.c.b16 %v1409, %v1409
  %v1474 = vpack.c.b16 %v1410, %v1410
  %v1475 = vpack.c.b16 %v1411, %v1411
  %v1476 = vpack.c.b16 %v1412, %v1412
  %v1477 = vpack.c.b16 %v1413, %v1413
  %v1478 = vpack.c.b16 %v1414, %v1414
  %v1479 = vpack.c.b16 %v1415, %v1415
  %v1480 = vpack.c.b16 %v1416, %v1416
  %v1481 = vpack.c.b16 %v1417, %v1417
  %v1482 = vpack.c.b16 %v1418, %v1418
  %v1483 = vpack.c.b16 %v1419, %v1419
  %v1484 = vpack.c.b16 %v1420, %v1420
  %v1485 = vpack.c.b16 %v1421, %v1421
  %v1486 = vpack.c.b16 %v1422, %v1422
  %v1487 = vpack.c.b16 %v1423, %v1423
  %v1488 = vpack.c.b16 %v1424, %v1424
  %v1489 = vpack.c.b16 %v1425, %v1425
  %v1490 = vpack.c.b16 %v1426, %v1426
  %v1491 = vpack.c.b16 %v1427, %v1427
  %v1492 = vpack.c.b16 %v1428, %v1428
  %v1493 = vpack.c.b16 %v1429, %v1429
  %v1494 = vpack.c.b16 %v1430, %v1430
  %v1495 = vpack.c.b16 %v1431, %v1431
  %v1496 = vpack.c.b16 %v1432, %v1432
  %v1497 = vpack.c.b16 %v1433, %v1433
  %v1498 = vpack.c.b16 %v1434, %v1434
  %v1499 = vpack.c.b16 %v1435, %v1435
  %v1500 = vpack.c.b16 %v1436, %v1436
  %v1501 = vpack.c.b16 %v1437, %v1437
  %v1502 = vpack.c.b16 %v1438, %v1438
  %v1503 = vpack.c.b16 %v1439, %v1439
  %v1504 = vpack.c.b16 %v1440, %v1440
  %v1505 = vpack.c.b16 %v1441, %v1441
  %v1506 = vpack.c.b16 %v1442, %v1442
  %v1507 = vpack.c.b16 %v1443, %v1443
  %v1508 = vpack.c.b16 %v1444, %v1444
  %v1509 = vpack.c.b16 %v1445, %v1445
  %v1510 = vpack.c.b16 %v1446, %v1446
  %v1511 = vpack.c.b16 %v1447, %v1447
  %v1512 = vpack.c.b16 %v1448, %v1448
  %v1513 = vpack.c.b16 %v1449, %v1449
  %v1514 = vpack.c.b16 %v1450, %v1450
  %v1515 = vpack.c.b16 %v1451, %v1451
  %v1516 = vpack.c.b16 %v1452, %v1452
  %v1517 = vpack.c.b16 %v1453, %v1453
  %v1518 = vpack.c.b16 %v1454, %v1454
  %v1519 = vpack.c.b16 %v1455, %v1455
  %v1520 = vpack.c.b16 %v1456, %v1456
  %v1521 = vpack.c.b16 %v1457, %v1457
  %v1522 = vpack.c.b16 %v1458, %v1458
  %v1523 = vpack.c.b16 %v1459, %v1459
  %v1524 = vpack.c.b16 %v1460, %v1460
  %v1525 = vpack.c.b16 %v1461, %v1461
  %v1526 = vpack.c.b16 %v1462, %v1462
  %vm1591 = vcmask 27648
  %1592 = vst.msk [vmem:[%s9] sm:$0xf] %vm1591, %v1463
  %1593 = vst.msk [vmem:[%s9 + $0x4] sm:$0xf] %vm1591, %v1464
  %1594 = vst.msk [vmem:[%s9 + $0x8] sm:$0xf] %vm1591, %v1465
  %1595 = vst.msk [vmem:[%s9 + $0xc] sm:$0xf] %vm1591, %v1466
  %1596 = vst.msk [vmem:[%s9 + $0x10] sm:$0xf] %vm1591, %v1467
  %1597 = vst.msk [vmem:[%s9 + $0x14] sm:$0xf] %vm1591, %v1468
  %1598 = vst.msk [vmem:[%s9 + $0x18] sm:$0xf] %vm1591, %v1469
  %1599 = vst.msk [vmem:[%s9 + $0x1c] sm:$0xf] %vm1591, %v1470
  %1600 = vst.msk [vmem:[%s9 + $0x20] sm:$0xf] %vm1591, %v1471
  %1601 = vst.msk [vmem:[%s9 + $0x24] sm:$0xf] %vm1591, %v1472
  %1602 = vst.msk [vmem:[%s9 + $0x28] sm:$0xf] %vm1591, %v1473
  %1603 = vst.msk [vmem:[%s9 + $0x2c] sm:$0xf] %vm1591, %v1474
  %1604 = vst.msk [vmem:[%s9 + $0x30] sm:$0xf] %vm1591, %v1475
  %1605 = vst.msk [vmem:[%s9 + $0x34] sm:$0xf] %vm1591, %v1476
  %1606 = vst.msk [vmem:[%s9 + $0x38] sm:$0xf] %vm1591, %v1477
  %1607 = vst.msk [vmem:[%s9 + $0x3c] sm:$0xf] %vm1591, %v1478
  %1608 = vst.msk [vmem:[%s9 + $0x40] sm:$0xf] %vm1591, %v1479
  %1609 = vst.msk [vmem:[%s9 + $0x44] sm:$0xf] %vm1591, %v1480
  %1610 = vst.msk [vmem:[%s9 + $0x48] sm:$0xf] %vm1591, %v1481
  %1611 = vst.msk [vmem:[%s9 + $0x4c] sm:$0xf] %vm1591, %v1482
  %1612 = vst.msk [vmem:[%s9 + $0x50] sm:$0xf] %vm1591, %v1483
  %1613 = vst.msk [vmem:[%s9 + $0x54] sm:$0xf] %vm1591, %v1484
  %1614 = vst.msk [vmem:[%s9 + $0x58] sm:$0xf] %vm1591, %v1485
  %1615 = vst.msk [vmem:[%s9 + $0x5c] sm:$0xf] %vm1591, %v1486
  %1616 = vst.msk [vmem:[%s9 + $0x60] sm:$0xf] %vm1591, %v1487
  %1617 = vst.msk [vmem:[%s9 + $0x64] sm:$0xf] %vm1591, %v1488
  %1618 = vst.msk [vmem:[%s9 + $0x68] sm:$0xf] %vm1591, %v1489
  %1619 = vst.msk [vmem:[%s9 + $0x6c] sm:$0xf] %vm1591, %v1490
  %1620 = vst.msk [vmem:[%s9 + $0x70] sm:$0xf] %vm1591, %v1491
  %1621 = vst.msk [vmem:[%s9 + $0x74] sm:$0xf] %vm1591, %v1492
  %1622 = vst.msk [vmem:[%s9 + $0x78] sm:$0xf] %vm1591, %v1493
  %1623 = vst.msk [vmem:[%s9 + $0x7c] sm:$0xf] %vm1591, %v1494
  %1624 = vst.msk [vmem:[%s9 + $0x80] sm:$0xf] %vm1591, %v1495
  %1625 = vst.msk [vmem:[%s9 + $0x84] sm:$0xf] %vm1591, %v1496
  %1626 = vst.msk [vmem:[%s9 + $0x88] sm:$0xf] %vm1591, %v1497
  %1627 = vst.msk [vmem:[%s9 + $0x8c] sm:$0xf] %vm1591, %v1498
  %1628 = vst.msk [vmem:[%s9 + $0x90] sm:$0xf] %vm1591, %v1499
  %1629 = vst.msk [vmem:[%s9 + $0x94] sm:$0xf] %vm1591, %v1500
  %1630 = vst.msk [vmem:[%s9 + $0x98] sm:$0xf] %vm1591, %v1501
  %1631 = vst.msk [vmem:[%s9 + $0x9c] sm:$0xf] %vm1591, %v1502
  %1632 = vst.msk [vmem:[%s9 + $0xa0] sm:$0xf] %vm1591, %v1503
  %1633 = vst.msk [vmem:[%s9 + $0xa4] sm:$0xf] %vm1591, %v1504
  %1634 = vst.msk [vmem:[%s9 + $0xa8] sm:$0xf] %vm1591, %v1505
  %1635 = vst.msk [vmem:[%s9 + $0xac] sm:$0xf] %vm1591, %v1506
  %1636 = vst.msk [vmem:[%s9 + $0xb0] sm:$0xf] %vm1591, %v1507
  %1637 = vst.msk [vmem:[%s9 + $0xb4] sm:$0xf] %vm1591, %v1508
  %1638 = vst.msk [vmem:[%s9 + $0xb8] sm:$0xf] %vm1591, %v1509
  %1639 = vst.msk [vmem:[%s9 + $0xbc] sm:$0xf] %vm1591, %v1510
  %1640 = vst.msk [vmem:[%s9 + $0xc0] sm:$0xf] %vm1591, %v1511
  %1641 = vst.msk [vmem:[%s9 + $0xc4] sm:$0xf] %vm1591, %v1512
  %1642 = vst.msk [vmem:[%s9 + $0xc8] sm:$0xf] %vm1591, %v1513
  %1643 = vst.msk [vmem:[%s9 + $0xcc] sm:$0xf] %vm1591, %v1514
  %1644 = vst.msk [vmem:[%s9 + $0xd0] sm:$0xf] %vm1591, %v1515
  %1645 = vst.msk [vmem:[%s9 + $0xd4] sm:$0xf] %vm1591, %v1516
  %1646 = vst.msk [vmem:[%s9 + $0xd8] sm:$0xf] %vm1591, %v1517
  %1647 = vst.msk [vmem:[%s9 + $0xdc] sm:$0xf] %vm1591, %v1518
  %1648 = vst.msk [vmem:[%s9 + $0xe0] sm:$0xf] %vm1591, %v1519
  %1649 = vst.msk [vmem:[%s9 + $0xe4] sm:$0xf] %vm1591, %v1520
  %1650 = vst.msk [vmem:[%s9 + $0xe8] sm:$0xf] %vm1591, %v1521
  %1651 = vst.msk [vmem:[%s9 + $0xec] sm:$0xf] %vm1591, %v1522
  %1652 = vst.msk [vmem:[%s9 + $0xf0] sm:$0xf] %vm1591, %v1523
  %1653 = vst.msk [vmem:[%s9 + $0xf4] sm:$0xf] %vm1591, %v1524
  %1654 = vst.msk [vmem:[%s9 + $0xf8] sm:$0xf] %vm1591, %v1525
  %1655 = vst.msk [vmem:[%s9 + $0xfc] sm:$0xf] %vm1591, %v1526
  %v1656 = vld [vmem:[%s4] sm:$0x3]
  %v1657 = vld [vmem:[%s7] sm:$0x1]
  %v1659 = vlaneseq
  %v1660 = vshrl.u32 %v1659, 7
  %v1661 = vsub.s32 0, %v1660
  %v1662 = vrot.slane %v1657, %v1661
  %v1665 = vsel %vm423, %v1656, 0
  %1667 = vmatprep.subr.bf16.mxu0 0
  %1668 = vmatpush1.bf16.msra.mxu0 %v1665
  %1669 = vmatprep.subr.bf16.mxu0 0
  %1670 = vmatpush1.bf16.msra.mxu0 0
  %1671 = vmatprep.subr.bf16.mxu0 0
  %1672 = vmatpush1.bf16.msra.mxu0 0
  %1673 = vmatprep.subr.bf16.mxu0 0
  %1674 = vmatpush1.bf16.msra.mxu0 0
  %1675 = vmatprep.subr.bf16.mxu0 0
  %1676 = vmatpush1.bf16.msra.mxu0 0
  %1677 = vmatprep.subr.bf16.mxu0 0
  %1678 = vmatpush1.bf16.msra.mxu0 0
  %1679 = vmatprep.subr.bf16.mxu0 0
  %1680 = vmatpush1.bf16.msra.mxu0 0
  %1681 = vmatprep.subr.bf16.mxu0 0
  %1682 = vmatpush1.bf16.msra.mxu0 0
  %1683 = vmatprep.subr.bf16.mxu0 0
  %1684 = vmatpush1.bf16.msra.mxu0 0
  %1685 = vmatprep.subr.bf16.mxu0 0
  %1686 = vmatpush1.bf16.msra.mxu0 0
  %1687 = vmatprep.subr.bf16.mxu0 0
  %1688 = vmatpush1.bf16.msra.mxu0 0
  %1689 = vmatprep.subr.bf16.mxu0 0
  %1690 = vmatpush1.bf16.msra.mxu0 0
  %1691 = vmatprep.subr.bf16.mxu0 0
  %1692 = vmatpush1.bf16.msra.mxu0 0
  %1693 = vmatprep.subr.bf16.mxu0 0
  %1694 = vmatpush1.bf16.msra.mxu0 0
  %1695 = vmatprep.subr.bf16.mxu0 0
  %1696 = vmatpush1.bf16.msra.mxu0 0
  %1697 = vmatprep.subr.bf16.mxu0 0
  %1698 = vmatpush1.bf16.msra.mxu0 0
  %1699 = vmatprep.mubr.bf16.mxu0 0
  %1700 = vmatmul.mubr.bf16.gmra.mrb[0].mxu0 %v877
  %v1701 = vpop.f32.mrb[0].mxu0
  %v1702 = vadd.f32 %v1662, %v1701
  %v1703 = vpop.f32.mrb[0].mxu0
  %v1704 = vpop.f32.mrb[0].mxu0
  %v1705 = vadd.f32 %v1662, %v1704
  %v1706 = vpop.f32.mrb[0].mxu0
  %1707 = vmatprep.mubr.bf16.mxu0 0
  %1708 = vmatmul.mubr.bf16.gmra.mrb[0].mxu0 %v880
  %v1709 = vpop.f32.mrb[0].mxu0
  %v1710 = vadd.f32 %v1662, %v1709
  %v1711 = vpop.f32.mrb[0].mxu0
  %v1712 = vpop.f32.mrb[0].mxu0
  %v1713 = vadd.f32 %v1662, %v1712
  %v1714 = vpop.f32.mrb[0].mxu0
  %1715 = vmatprep.mubr.bf16.mxu0 0
  %1716 = vmatmul.mubr.bf16.gmra.mrb[0].mxu0 %v883
  %v1717 = vpop.f32.mrb[0].mxu0
  %v1718 = vadd.f32 %v1662, %v1717
  %v1719 = vpop.f32.mrb[0].mxu0
  %v1720 = vpop.f32.mrb[0].mxu0
  %v1721 = vadd.f32 %v1662, %v1720
  %v1722 = vpop.f32.mrb[0].mxu0
  %1723 = vmatprep.mubr.bf16.mxu0 0
  %1724 = vmatmul.mubr.bf16.gmra.mrb[0].mxu0 %v886
  %v1725 = vpop.f32.mrb[0].mxu0
  %v1726 = vadd.f32 %v1662, %v1725
  %v1727 = vpop.f32.mrb[0].mxu0
  %v1728 = vpop.f32.mrb[0].mxu0
  %v1729 = vadd.f32 %v1662, %v1728
  %v1730 = vpop.f32.mrb[0].mxu0
  %1731 = vmatprep.mubr.bf16.mxu0 0
  %1732 = vmatmul.mubr.bf16.gmra.mrb[0].mxu0 %v889
  %v1733 = vpop.f32.mrb[0].mxu0
  %v1734 = vadd.f32 %v1662, %v1733
  %v1735 = vpop.f32.mrb[0].mxu0
  %v1736 = vpop.f32.mrb[0].mxu0
  %v1737 = vadd.f32 %v1662, %v1736
  %v1738 = vpop.f32.mrb[0].mxu0
  %1739 = vmatprep.mubr.bf16.mxu0 0
  %1740 = vmatmul.mubr.bf16.gmra.mrb[0].mxu0 %v892
  %v1741 = vpop.f32.mrb[0].mxu0
  %v1742 = vadd.f32 %v1662, %v1741
  %v1743 = vpop.f32.mrb[0].mxu0
  %v1744 = vpop.f32.mrb[0].mxu0
  %v1745 = vadd.f32 %v1662, %v1744
  %v1746 = vpop.f32.mrb[0].mxu0
  %1747 = vmatprep.mubr.bf16.mxu0 0
  %1748 = vmatmul.mubr.bf16.gmra.mrb[0].mxu0 %v895
  %v1749 = vpop.f32.mrb[0].mxu0
  %v1750 = vadd.f32 %v1662, %v1749
  %v1751 = vpop.f32.mrb[0].mxu0
  %v1752 = vpop.f32.mrb[0].mxu0
  %v1753 = vadd.f32 %v1662, %v1752
  %v1754 = vpop.f32.mrb[0].mxu0
  %1755 = vmatprep.mubr.bf16.mxu0 0
  %1756 = vmatmul.mubr.bf16.gmra.mrb[0].mxu0 %v898
  %v1757 = vpop.f32.mrb[0].mxu0
  %v1758 = vadd.f32 %v1662, %v1757
  %v1759 = vpop.f32.mrb[0].mxu0
  %v1760 = vpop.f32.mrb[0].mxu0
  %v1761 = vadd.f32 %v1662, %v1760
  %v1762 = vpop.f32.mrb[0].mxu0
  %1763 = vmatprep.mubr.bf16.mxu0 0
  %1764 = vmatmul.mubr.bf16.gmra.mrb[0].mxu0 %v901
  %v1765 = vpop.f32.mrb[0].mxu0
  %v1766 = vadd.f32 %v1662, %v1765
  %v1767 = vpop.f32.mrb[0].mxu0
  %v1768 = vpop.f32.mrb[0].mxu0
  %v1769 = vadd.f32 %v1662, %v1768
  %v1770 = vpop.f32.mrb[0].mxu0
  %1771 = vmatprep.mubr.bf16.mxu0 0
  %1772 = vmatmul.mubr.bf16.gmra.mrb[0].mxu0 %v904
  %v1773 = vpop.f32.mrb[0].mxu0
  %v1774 = vadd.f32 %v1662, %v1773
  %v1775 = vpop.f32.mrb[0].mxu0
  %v1776 = vpop.f32.mrb[0].mxu0
  %v1777 = vadd.f32 %v1662, %v1776
  %v1778 = vpop.f32.mrb[0].mxu0
  %1779 = vmatprep.mubr.bf16.mxu0 0
  %1780 = vmatmul.mubr.bf16.gmra.mrb[0].mxu0 %v907
  %v1781 = vpop.f32.mrb[0].mxu0
  %v1782 = vadd.f32 %v1662, %v1781
  %v1783 = vpop.f32.mrb[0].mxu0
  %v1784 = vpop.f32.mrb[0].mxu0
  %v1785 = vadd.f32 %v1662, %v1784
  %v1786 = vpop.f32.mrb[0].mxu0
  %1787 = vmatprep.mubr.bf16.mxu0 0
  %1788 = vmatmul.mubr.bf16.gmra.mrb[0].mxu0 %v910
  %v1789 = vpop.f32.mrb[0].mxu0
  %v1790 = vadd.f32 %v1662, %v1789
  %v1791 = vpop.f32.mrb[0].mxu0
  %v1792 = vpop.f32.mrb[0].mxu0
  %v1793 = vadd.f32 %v1662, %v1792
  %v1794 = vpop.f32.mrb[0].mxu0
  %1795 = vmatprep.mubr.bf16.mxu0 0
  %1796 = vmatmul.mubr.bf16.gmra.mrb[0].mxu0 %v913
  %v1797 = vpop.f32.mrb[0].mxu0
  %v1798 = vadd.f32 %v1662, %v1797
  %v1799 = vpop.f32.mrb[0].mxu0
  %v1800 = vpop.f32.mrb[0].mxu0
  %v1801 = vadd.f32 %v1662, %v1800
  %v1802 = vpop.f32.mrb[0].mxu0
  %1803 = vmatprep.mubr.bf16.mxu0 0
  %1804 = vmatmul.mubr.bf16.gmra.mrb[0].mxu0 %v916
  %v1805 = vpop.f32.mrb[0].mxu0
  %v1806 = vadd.f32 %v1662, %v1805
  %v1807 = vpop.f32.mrb[0].mxu0
  %v1808 = vpop.f32.mrb[0].mxu0
  %v1809 = vadd.f32 %v1662, %v1808
  %v1810 = vpop.f32.mrb[0].mxu0
  %1811 = vmatprep.mubr.bf16.mxu0 0
  %1812 = vmatmul.mubr.bf16.gmra.mrb[0].mxu0 %v919
  %v1813 = vpop.f32.mrb[0].mxu0
  %v1814 = vadd.f32 %v1662, %v1813
  %v1815 = vpop.f32.mrb[0].mxu0
  %v1816 = vpop.f32.mrb[0].mxu0
  %v1817 = vadd.f32 %v1662, %v1816
  %v1818 = vpop.f32.mrb[0].mxu0
  %1819 = vmatprep.mubr.bf16.mxu0 0
  %1820 = vmatmul.mubr.bf16.gmra.mrb[0].mxu0 %v922
  %v1821 = vpop.f32.mrb[0].mxu0
  %v1822 = vadd.f32 %v1662, %v1821
  %v1823 = vpop.f32.mrb[0].mxu0
  %v1824 = vpop.f32.mrb[0].mxu0
  %v1825 = vadd.f32 %v1662, %v1824
  %v1826 = vpop.f32.mrb[0].mxu0
  %1827 = vmatprep.mubr.bf16.mxu0 0
  %1828 = vmatmul.mubr.bf16.gmra.mrb[0].mxu0 %v925
  %v1829 = vpop.f32.mrb[0].mxu0
  %v1830 = vadd.f32 %v1662, %v1829
  %v1831 = vpop.f32.mrb[0].mxu0
  %v1832 = vpop.f32.mrb[0].mxu0
  %v1833 = vadd.f32 %v1662, %v1832
  %v1834 = vpop.f32.mrb[0].mxu0
  %1835 = vmatprep.mubr.bf16.mxu0 0
  %1836 = vmatmul.mubr.bf16.gmra.mrb[0].mxu0 %v928
  %v1837 = vpop.f32.mrb[0].mxu0
  %v1838 = vadd.f32 %v1662, %v1837
  %v1839 = vpop.f32.mrb[0].mxu0
  %v1840 = vpop.f32.mrb[0].mxu0
  %v1841 = vadd.f32 %v1662, %v1840
  %v1842 = vpop.f32.mrb[0].mxu0
  %1843 = vmatprep.mubr.bf16.mxu0 0
  %1844 = vmatmul.mubr.bf16.gmra.mrb[0].mxu0 %v931
  %v1845 = vpop.f32.mrb[0].mxu0
  %v1846 = vadd.f32 %v1662, %v1845
  %v1847 = vpop.f32.mrb[0].mxu0
  %v1848 = vpop.f32.mrb[0].mxu0
  %v1849 = vadd.f32 %v1662, %v1848
  %v1850 = vpop.f32.mrb[0].mxu0
  %1851 = vmatprep.mubr.bf16.mxu0 0
  %1852 = vmatmul.mubr.bf16.gmra.mrb[0].mxu0 %v934
  %v1853 = vpop.f32.mrb[0].mxu0
  %v1854 = vadd.f32 %v1662, %v1853
  %v1855 = vpop.f32.mrb[0].mxu0
  %v1856 = vpop.f32.mrb[0].mxu0
  %v1857 = vadd.f32 %v1662, %v1856
  %v1858 = vpop.f32.mrb[0].mxu0
  %1859 = vmatprep.mubr.bf16.mxu0 0
  %1860 = vmatmul.mubr.bf16.gmra.mrb[0].mxu0 %v937
  %v1861 = vpop.f32.mrb[0].mxu0
  %v1862 = vadd.f32 %v1662, %v1861
  %v1863 = vpop.f32.mrb[0].mxu0
  %v1864 = vpop.f32.mrb[0].mxu0
  %v1865 = vadd.f32 %v1662, %v1864
  %v1866 = vpop.f32.mrb[0].mxu0
  %1867 = vmatprep.mubr.bf16.mxu0 0
  %1868 = vmatmul.mubr.bf16.gmra.mrb[0].mxu0 %v940
  %v1869 = vpop.f32.mrb[0].mxu0
  %v1870 = vadd.f32 %v1662, %v1869
  %v1871 = vpop.f32.mrb[0].mxu0
  %v1872 = vpop.f32.mrb[0].mxu0
  %v1873 = vadd.f32 %v1662, %v1872
  %v1874 = vpop.f32.mrb[0].mxu0
  %1875 = vmatprep.mubr.bf16.mxu0 0
  %1876 = vmatmul.mubr.bf16.gmra.mrb[0].mxu0 %v943
  %v1877 = vpop.f32.mrb[0].mxu0
  %v1878 = vadd.f32 %v1662, %v1877
  %v1879 = vpop.f32.mrb[0].mxu0
  %v1880 = vpop.f32.mrb[0].mxu0
  %v1881 = vadd.f32 %v1662, %v1880
  %v1882 = vpop.f32.mrb[0].mxu0
  %1883 = vmatprep.mubr.bf16.mxu0 0
  %1884 = vmatmul.mubr.bf16.gmra.mrb[0].mxu0 %v946
  %v1885 = vpop.f32.mrb[0].mxu0
  %v1886 = vadd.f32 %v1662, %v1885
  %v1887 = vpop.f32.mrb[0].mxu0
  %v1888 = vpop.f32.mrb[0].mxu0
  %v1889 = vadd.f32 %v1662, %v1888
  %v1890 = vpop.f32.mrb[0].mxu0
  %1891 = vmatprep.mubr.bf16.mxu0 0
  %1892 = vmatmul.mubr.bf16.gmra.mrb[0].mxu0 %v949
  %v1893 = vpop.f32.mrb[0].mxu0
  %v1894 = vadd.f32 %v1662, %v1893
  %v1895 = vpop.f32.mrb[0].mxu0
  %v1896 = vpop.f32.mrb[0].mxu0
  %v1897 = vadd.f32 %v1662, %v1896
  %v1898 = vpop.f32.mrb[0].mxu0
  %1899 = vmatprep.mubr.bf16.mxu0 0
  %1900 = vmatmul.mubr.bf16.gmra.mrb[0].mxu0 %v952
  %v1901 = vpop.f32.mrb[0].mxu0
  %v1902 = vadd.f32 %v1662, %v1901
  %v1903 = vpop.f32.mrb[0].mxu0
  %v1904 = vpop.f32.mrb[0].mxu0
  %v1905 = vadd.f32 %v1662, %v1904
  %v1906 = vpop.f32.mrb[0].mxu0
  %1907 = vmatprep.mubr.bf16.mxu0 0
  %1908 = vmatmul.mubr.bf16.gmra.mrb[0].mxu0 %v955
  %v1909 = vpop.f32.mrb[0].mxu0
  %v1910 = vadd.f32 %v1662, %v1909
  %v1911 = vpop.f32.mrb[0].mxu0
  %v1912 = vpop.f32.mrb[0].mxu0
  %v1913 = vadd.f32 %v1662, %v1912
  %v1914 = vpop.f32.mrb[0].mxu0
  %1915 = vmatprep.mubr.bf16.mxu0 0
  %1916 = vmatmul.mubr.bf16.gmra.mrb[0].mxu0 %v958
  %v1917 = vpop.f32.mrb[0].mxu0
  %v1918 = vadd.f32 %v1662, %v1917
  %v1919 = vpop.f32.mrb[0].mxu0
  %v1920 = vpop.f32.mrb[0].mxu0
  %v1921 = vadd.f32 %v1662, %v1920
  %v1922 = vpop.f32.mrb[0].mxu0
  %1923 = vmatprep.mubr.bf16.mxu0 0
  %1924 = vmatmul.mubr.bf16.gmra.mrb[0].mxu0 %v961
  %v1925 = vpop.f32.mrb[0].mxu0
  %v1926 = vadd.f32 %v1662, %v1925
  %v1927 = vpop.f32.mrb[0].mxu0
  %v1928 = vpop.f32.mrb[0].mxu0
  %v1929 = vadd.f32 %v1662, %v1928
  %v1930 = vpop.f32.mrb[0].mxu0
  %1931 = vmatprep.mubr.bf16.mxu0 0
  %1932 = vmatmul.mubr.bf16.gmra.mrb[0].mxu0 %v964
  %v1933 = vpop.f32.mrb[0].mxu0
  %v1934 = vadd.f32 %v1662, %v1933
  %v1935 = vpop.f32.mrb[0].mxu0
  %v1936 = vpop.f32.mrb[0].mxu0
  %v1937 = vadd.f32 %v1662, %v1936
  %v1938 = vpop.f32.mrb[0].mxu0
  %1939 = vmatprep.mubr.bf16.mxu0 0
  %1940 = vmatmul.mubr.bf16.gmra.mrb[0].mxu0 %v967
  %v1941 = vpop.f32.mrb[0].mxu0
  %v1942 = vadd.f32 %v1662, %v1941
  %v1943 = vpop.f32.mrb[0].mxu0
  %v1944 = vpop.f32.mrb[0].mxu0
  %v1945 = vadd.f32 %v1662, %v1944
  %v1946 = vpop.f32.mrb[0].mxu0
  %1947 = vmatprep.mubr.bf16.mxu0 0
  %1948 = vmatmul.mubr.bf16.gmra.mrb[0].mxu0 %v970
  %v1949 = vpop.f32.mrb[0].mxu0
  %v1950 = vadd.f32 %v1662, %v1949
  %v1951 = vpop.f32.mrb[0].mxu0
  %v1952 = vpop.f32.mrb[0].mxu0
  %v1953 = vadd.f32 %v1662, %v1952
  %v1954 = vpop.f32.mrb[0].mxu0
  %1955 = vdwg.mxu0
  %v1956 = vpack.c.bf16 %v1705, %v1702
  %v1957 = vpack.c.bf16 %v1713, %v1710
  %v1958 = vpack.c.bf16 %v1721, %v1718
  %v1959 = vpack.c.bf16 %v1729, %v1726
  %v1960 = vpack.c.bf16 %v1737, %v1734
  %v1961 = vpack.c.bf16 %v1745, %v1742
  %v1962 = vpack.c.bf16 %v1753, %v1750
  %v1963 = vpack.c.bf16 %v1761, %v1758
  %v1964 = vpack.c.bf16 %v1769, %v1766
  %v1965 = vpack.c.bf16 %v1777, %v1774
  %v1966 = vpack.c.bf16 %v1785, %v1782
  %v1967 = vpack.c.bf16 %v1793, %v1790
  %v1968 = vpack.c.bf16 %v1801, %v1798
  %v1969 = vpack.c.bf16 %v1809, %v1806
  %v1970 = vpack.c.bf16 %v1817, %v1814
  %v1971 = vpack.c.bf16 %v1825, %v1822
  %v1972 = vpack.c.bf16 %v1833, %v1830
  %v1973 = vpack.c.bf16 %v1841, %v1838
  %v1974 = vpack.c.bf16 %v1849, %v1846
  %v1975 = vpack.c.bf16 %v1857, %v1854
  %v1976 = vpack.c.bf16 %v1865, %v1862
  %v1977 = vpack.c.bf16 %v1873, %v1870
  %v1978 = vpack.c.bf16 %v1881, %v1878
  %v1979 = vpack.c.bf16 %v1889, %v1886
  %v1980 = vpack.c.bf16 %v1897, %v1894
  %v1981 = vpack.c.bf16 %v1905, %v1902
  %v1982 = vpack.c.bf16 %v1913, %v1910
  %v1983 = vpack.c.bf16 %v1921, %v1918
  %v1984 = vpack.c.bf16 %v1929, %v1926
  %v1985 = vpack.c.bf16 %v1937, %v1934
  %v1986 = vpack.c.bf16 %v1945, %v1942
  %v1987 = vpack.c.bf16 %v1953, %v1950
  %v2020 = vunpack.c.l.b16 %v1956
  %v2021 = vunpack.c.h.b16 %v1956
  %v2022 = vunpack.c.l.b16 %v1957
  %v2023 = vunpack.c.h.b16 %v1957
  %v2024 = vunpack.c.l.b16 %v1958
  %v2025 = vunpack.c.h.b16 %v1958
  %v2026 = vunpack.c.l.b16 %v1959
  %v2027 = vunpack.c.h.b16 %v1959
  %v2028 = vunpack.c.l.b16 %v1960
  %v2029 = vunpack.c.h.b16 %v1960
  %v2030 = vunpack.c.l.b16 %v1961
  %v2031 = vunpack.c.h.b16 %v1961
  %v2032 = vunpack.c.l.b16 %v1962
  %v2033 = vunpack.c.h.b16 %v1962
  %v2034 = vunpack.c.l.b16 %v1963
  %v2035 = vunpack.c.h.b16 %v1963
  %v2036 = vunpack.c.l.b16 %v1964
  %v2037 = vunpack.c.h.b16 %v1964
  %v2038 = vunpack.c.l.b16 %v1965
  %v2039 = vunpack.c.h.b16 %v1965
  %v2040 = vunpack.c.l.b16 %v1966
  %v2041 = vunpack.c.h.b16 %v1966
  %v2042 = vunpack.c.l.b16 %v1967
  %v2043 = vunpack.c.h.b16 %v1967
  %v2044 = vunpack.c.l.b16 %v1968
  %v2045 = vunpack.c.h.b16 %v1968
  %v2046 = vunpack.c.l.b16 %v1969
  %v2047 = vunpack.c.h.b16 %v1969
  %v2048 = vunpack.c.l.b16 %v1970
  %v2049 = vunpack.c.h.b16 %v1970
  %v2050 = vunpack.c.l.b16 %v1971
  %v2051 = vunpack.c.h.b16 %v1971
  %v2052 = vunpack.c.l.b16 %v1972
  %v2053 = vunpack.c.h.b16 %v1972
  %v2054 = vunpack.c.l.b16 %v1973
  %v2055 = vunpack.c.h.b16 %v1973
  %v2056 = vunpack.c.l.b16 %v1974
  %v2057 = vunpack.c.h.b16 %v1974
  %v2058 = vunpack.c.l.b16 %v1975
  %v2059 = vunpack.c.h.b16 %v1975
  %v2060 = vunpack.c.l.b16 %v1976
  %v2061 = vunpack.c.h.b16 %v1976
  %v2062 = vunpack.c.l.b16 %v1977
  %v2063 = vunpack.c.h.b16 %v1977
  %v2064 = vunpack.c.l.b16 %v1978
  %v2065 = vunpack.c.h.b16 %v1978
  %v2066 = vunpack.c.l.b16 %v1979
  %v2067 = vunpack.c.h.b16 %v1979
  %v2068 = vunpack.c.l.b16 %v1980
  %v2069 = vunpack.c.h.b16 %v1980
  %v2070 = vunpack.c.l.b16 %v1981
  %v2071 = vunpack.c.h.b16 %v1981
  %v2072 = vunpack.c.l.b16 %v1982
  %v2073 = vunpack.c.h.b16 %v1982
  %v2074 = vunpack.c.l.b16 %v1983
  %v2075 = vunpack.c.h.b16 %v1983
  %v2076 = vunpack.c.l.b16 %v1984
  %v2077 = vunpack.c.h.b16 %v1984
  %v2078 = vunpack.c.l.b16 %v1985
  %v2079 = vunpack.c.h.b16 %v1985
  %v2080 = vunpack.c.l.b16 %v1986
  %v2081 = vunpack.c.h.b16 %v1986
  %v2082 = vunpack.c.l.b16 %v1987
  %v2083 = vunpack.c.h.b16 %v1987
  %v2084 = vpack.c.b16 %v2020, %v2020
  %v2085 = vpack.c.b16 %v2021, %v2021
  %v2086 = vpack.c.b16 %v2022, %v2022
  %v2087 = vpack.c.b16 %v2023, %v2023
  %v2088 = vpack.c.b16 %v2024, %v2024
  %v2089 = vpack.c.b16 %v2025, %v2025
  %v2090 = vpack.c.b16 %v2026, %v2026
  %v2091 = vpack.c.b16 %v2027, %v2027
  %v2092 = vpack.c.b16 %v2028, %v2028
  %v2093 = vpack.c.b16 %v2029, %v2029
  %v2094 = vpack.c.b16 %v2030, %v2030
  %v2095 = vpack.c.b16 %v2031, %v2031
  %v2096 = vpack.c.b16 %v2032, %v2032
  %v2097 = vpack.c.b16 %v2033, %v2033
  %v2098 = vpack.c.b16 %v2034, %v2034
  %v2099 = vpack.c.b16 %v2035, %v2035
  %v2100 = vpack.c.b16 %v2036, %v2036
  %v2101 = vpack.c.b16 %v2037, %v2037
  %v2102 = vpack.c.b16 %v2038, %v2038
  %v2103 = vpack.c.b16 %v2039, %v2039
  %v2104 = vpack.c.b16 %v2040, %v2040
  %v2105 = vpack.c.b16 %v2041, %v2041
  %v2106 = vpack.c.b16 %v2042, %v2042
  %v2107 = vpack.c.b16 %v2043, %v2043
  %v2108 = vpack.c.b16 %v2044, %v2044
  %v2109 = vpack.c.b16 %v2045, %v2045
  %v2110 = vpack.c.b16 %v2046, %v2046
  %v2111 = vpack.c.b16 %v2047, %v2047
  %v2112 = vpack.c.b16 %v2048, %v2048
  %v2113 = vpack.c.b16 %v2049, %v2049
  %v2114 = vpack.c.b16 %v2050, %v2050
  %v2115 = vpack.c.b16 %v2051, %v2051
  %v2116 = vpack.c.b16 %v2052, %v2052
  %v2117 = vpack.c.b16 %v2053, %v2053
  %v2118 = vpack.c.b16 %v2054, %v2054
  %v2119 = vpack.c.b16 %v2055, %v2055
  %v2120 = vpack.c.b16 %v2056, %v2056
  %v2121 = vpack.c.b16 %v2057, %v2057
  %v2122 = vpack.c.b16 %v2058, %v2058
  %v2123 = vpack.c.b16 %v2059, %v2059
  %v2124 = vpack.c.b16 %v2060, %v2060
  %v2125 = vpack.c.b16 %v2061, %v2061
  %v2126 = vpack.c.b16 %v2062, %v2062
  %v2127 = vpack.c.b16 %v2063, %v2063
  %v2128 = vpack.c.b16 %v2064, %v2064
  %v2129 = vpack.c.b16 %v2065, %v2065
  %v2130 = vpack.c.b16 %v2066, %v2066
  %v2131 = vpack.c.b16 %v2067, %v2067
  %v2132 = vpack.c.b16 %v2068, %v2068
  %v2133 = vpack.c.b16 %v2069, %v2069
  %v2134 = vpack.c.b16 %v2070, %v2070
  %v2135 = vpack.c.b16 %v2071, %v2071
  %v2136 = vpack.c.b16 %v2072, %v2072
  %v2137 = vpack.c.b16 %v2073, %v2073
  %v2138 = vpack.c.b16 %v2074, %v2074
  %v2139 = vpack.c.b16 %v2075, %v2075
  %v2140 = vpack.c.b16 %v2076, %v2076
  %v2141 = vpack.c.b16 %v2077, %v2077
  %v2142 = vpack.c.b16 %v2078, %v2078
  %v2143 = vpack.c.b16 %v2079, %v2079
  %v2144 = vpack.c.b16 %v2080, %v2080
  %v2145 = vpack.c.b16 %v2081, %v2081
  %v2146 = vpack.c.b16 %v2082, %v2082
  %v2147 = vpack.c.b16 %v2083, %v2083
  %2212 = vst.msk [vmem:[%s10] sm:$0xf] %vm1591, %v2084
  %2213 = vst.msk [vmem:[%s10 + $0x4] sm:$0xf] %vm1591, %v2085
  %2214 = vst.msk [vmem:[%s10 + $0x8] sm:$0xf] %vm1591, %v2086
  %2215 = vst.msk [vmem:[%s10 + $0xc] sm:$0xf] %vm1591, %v2087
  %2216 = vst.msk [vmem:[%s10 + $0x10] sm:$0xf] %vm1591, %v2088
  %2217 = vst.msk [vmem:[%s10 + $0x14] sm:$0xf] %vm1591, %v2089
  %2218 = vst.msk [vmem:[%s10 + $0x18] sm:$0xf] %vm1591, %v2090
  %2219 = vst.msk [vmem:[%s10 + $0x1c] sm:$0xf] %vm1591, %v2091
  %2220 = vst.msk [vmem:[%s10 + $0x20] sm:$0xf] %vm1591, %v2092
  %2221 = vst.msk [vmem:[%s10 + $0x24] sm:$0xf] %vm1591, %v2093
  %2222 = vst.msk [vmem:[%s10 + $0x28] sm:$0xf] %vm1591, %v2094
  %2223 = vst.msk [vmem:[%s10 + $0x2c] sm:$0xf] %vm1591, %v2095
  %2224 = vst.msk [vmem:[%s10 + $0x30] sm:$0xf] %vm1591, %v2096
  %2225 = vst.msk [vmem:[%s10 + $0x34] sm:$0xf] %vm1591, %v2097
  %2226 = vst.msk [vmem:[%s10 + $0x38] sm:$0xf] %vm1591, %v2098
  %2227 = vst.msk [vmem:[%s10 + $0x3c] sm:$0xf] %vm1591, %v2099
  %2228 = vst.msk [vmem:[%s10 + $0x40] sm:$0xf] %vm1591, %v2100
  %2229 = vst.msk [vmem:[%s10 + $0x44] sm:$0xf] %vm1591, %v2101
  %2230 = vst.msk [vmem:[%s10 + $0x48] sm:$0xf] %vm1591, %v2102
  %2231 = vst.msk [vmem:[%s10 + $0x4c] sm:$0xf] %vm1591, %v2103
  %2232 = vst.msk [vmem:[%s10 + $0x50] sm:$0xf] %vm1591, %v2104
  %2233 = vst.msk [vmem:[%s10 + $0x54] sm:$0xf] %vm1591, %v2105
  %2234 = vst.msk [vmem:[%s10 + $0x58] sm:$0xf] %vm1591, %v2106
  %2235 = vst.msk [vmem:[%s10 + $0x5c] sm:$0xf] %vm1591, %v2107
  %2236 = vst.msk [vmem:[%s10 + $0x60] sm:$0xf] %vm1591, %v2108
  %2237 = vst.msk [vmem:[%s10 + $0x64] sm:$0xf] %vm1591, %v2109
  %2238 = vst.msk [vmem:[%s10 + $0x68] sm:$0xf] %vm1591, %v2110
  %2239 = vst.msk [vmem:[%s10 + $0x6c] sm:$0xf] %vm1591, %v2111
  %2240 = vst.msk [vmem:[%s10 + $0x70] sm:$0xf] %vm1591, %v2112
  %2241 = vst.msk [vmem:[%s10 + $0x74] sm:$0xf] %vm1591, %v2113
  %2242 = vst.msk [vmem:[%s10 + $0x78] sm:$0xf] %vm1591, %v2114
  %2243 = vst.msk [vmem:[%s10 + $0x7c] sm:$0xf] %vm1591, %v2115
  %2244 = vst.msk [vmem:[%s10 + $0x80] sm:$0xf] %vm1591, %v2116
  %2245 = vst.msk [vmem:[%s10 + $0x84] sm:$0xf] %vm1591, %v2117
  %2246 = vst.msk [vmem:[%s10 + $0x88] sm:$0xf] %vm1591, %v2118
  %2247 = vst.msk [vmem:[%s10 + $0x8c] sm:$0xf] %vm1591, %v2119
  %2248 = vst.msk [vmem:[%s10 + $0x90] sm:$0xf] %vm1591, %v2120
  %2249 = vst.msk [vmem:[%s10 + $0x94] sm:$0xf] %vm1591, %v2121
  %2250 = vst.msk [vmem:[%s10 + $0x98] sm:$0xf] %vm1591, %v2122
  %2251 = vst.msk [vmem:[%s10 + $0x9c] sm:$0xf] %vm1591, %v2123
  %2252 = vst.msk [vmem:[%s10 + $0xa0] sm:$0xf] %vm1591, %v2124
  %2253 = vst.msk [vmem:[%s10 + $0xa4] sm:$0xf] %vm1591, %v2125
  %2254 = vst.msk [vmem:[%s10 + $0xa8] sm:$0xf] %vm1591, %v2126
  %2255 = vst.msk [vmem:[%s10 + $0xac] sm:$0xf] %vm1591, %v2127
  %2256 = vst.msk [vmem:[%s10 + $0xb0] sm:$0xf] %vm1591, %v2128
  %2257 = vst.msk [vmem:[%s10 + $0xb4] sm:$0xf] %vm1591, %v2129
  %2258 = vst.msk [vmem:[%s10 + $0xb8] sm:$0xf] %vm1591, %v2130
  %2259 = vst.msk [vmem:[%s10 + $0xbc] sm:$0xf] %vm1591, %v2131
  %2260 = vst.msk [vmem:[%s10 + $0xc0] sm:$0xf] %vm1591, %v2132
  %2261 = vst.msk [vmem:[%s10 + $0xc4] sm:$0xf] %vm1591, %v2133
  %2262 = vst.msk [vmem:[%s10 + $0xc8] sm:$0xf] %vm1591, %v2134
  %2263 = vst.msk [vmem:[%s10 + $0xcc] sm:$0xf] %vm1591, %v2135
  %2264 = vst.msk [vmem:[%s10 + $0xd0] sm:$0xf] %vm1591, %v2136
  %2265 = vst.msk [vmem:[%s10 + $0xd4] sm:$0xf] %vm1591, %v2137
  %2266 = vst.msk [vmem:[%s10 + $0xd8] sm:$0xf] %vm1591, %v2138
  %2267 = vst.msk [vmem:[%s10 + $0xdc] sm:$0xf] %vm1591, %v2139
  %2268 = vst.msk [vmem:[%s10 + $0xe0] sm:$0xf] %vm1591, %v2140
  %2269 = vst.msk [vmem:[%s10 + $0xe4] sm:$0xf] %vm1591, %v2141
  %2270 = vst.msk [vmem:[%s10 + $0xe8] sm:$0xf] %vm1591, %v2142
  %2271 = vst.msk [vmem:[%s10 + $0xec] sm:$0xf] %vm1591, %v2143
  %2272 = vst.msk [vmem:[%s10 + $0xf0] sm:$0xf] %vm1591, %v2144
  %2273 = vst.msk [vmem:[%s10 + $0xf4] sm:$0xf] %vm1591, %v2145
  %2274 = vst.msk [vmem:[%s10 + $0xf8] sm:$0xf] %vm1591, %v2146
  %2275 = vst.msk [vmem:[%s10 + $0xfc] sm:$0xf] %vm1591, %v2147
  %v2276 = vld [vmem:[%s5] sm:$0x3]
  %v2277 = vld [vmem:[%s8] sm:$0x1]
  %v2279 = vlaneseq
  %v2280 = vshrl.u32 %v2279, 7
  %v2281 = vsub.s32 0, %v2280
  %v2282 = vrot.slane %v2277, %v2281
  %v2285 = vsel %vm423, %v2276, 0
  %2287 = vmatprep.subr.bf16.mxu0 0
  %2288 = vmatpush1.bf16.msra.mxu0 %v2285
  %2289 = vmatprep.subr.bf16.mxu0 0
  %2290 = vmatpush1.bf16.msra.mxu0 0
  %2291 = vmatprep.subr.bf16.mxu0 0
  %2292 = vmatpush1.bf16.msra.mxu0 0
  %2293 = vmatprep.subr.bf16.mxu0 0
  %2294 = vmatpush1.bf16.msra.mxu0 0
  %2295 = vmatprep.subr.bf16.mxu0 0
  %2296 = vmatpush1.bf16.msra.mxu0 0
  %2297 = vmatprep.subr.bf16.mxu0 0
  %2298 = vmatpush1.bf16.msra.mxu0 0
  %2299 = vmatprep.subr.bf16.mxu0 0
  %2300 = vmatpush1.bf16.msra.mxu0 0
  %2301 = vmatprep.subr.bf16.mxu0 0
  %2302 = vmatpush1.bf16.msra.mxu0 0
  %2303 = vmatprep.subr.bf16.mxu0 0
  %2304 = vmatpush1.bf16.msra.mxu0 0
  %2305 = vmatprep.subr.bf16.mxu0 0
  %2306 = vmatpush1.bf16.msra.mxu0 0
  %2307 = vmatprep.subr.bf16.mxu0 0
  %2308 = vmatpush1.bf16.msra.mxu0 0
  %2309 = vmatprep.subr.bf16.mxu0 0
  %2310 = vmatpush1.bf16.msra.mxu0 0
  %2311 = vmatprep.subr.bf16.mxu0 0
  %2312 = vmatpush1.bf16.msra.mxu0 0
  %2313 = vmatprep.subr.bf16.mxu0 0
  %2314 = vmatpush1.bf16.msra.mxu0 0
  %2315 = vmatprep.subr.bf16.mxu0 0
  %2316 = vmatpush1.bf16.msra.mxu0 0
  %2317 = vmatprep.subr.bf16.mxu0 0
  %2318 = vmatpush1.bf16.msra.mxu0 0
  %2319 = vmatprep.mubr.bf16.mxu0 0
  %2320 = vmatmul.mubr.bf16.gmra.mrb[0].mxu0 %v328
  %v2321 = vpop.f32.mrb[0].mxu0
  %v2322 = vadd.f32 %v2282, %v2321
  %v2323 = vpop.f32.mrb[0].mxu0
  %v2324 = vpop.f32.mrb[0].mxu0
  %v2325 = vadd.f32 %v2282, %v2324
  %v2326 = vpop.f32.mrb[0].mxu0
  %2327 = vmatprep.mubr.bf16.mxu0 0
  %2328 = vmatmul.mubr.bf16.gmra.mrb[0].mxu0 %v331
  %v2329 = vpop.f32.mrb[0].mxu0
  %v2330 = vadd.f32 %v2282, %v2329
  %v2331 = vpop.f32.mrb[0].mxu0
  %v2332 = vpop.f32.mrb[0].mxu0
  %v2333 = vadd.f32 %v2282, %v2332
  %v2334 = vpop.f32.mrb[0].mxu0
  %2335 = vmatprep.mubr.bf16.mxu0 0
  %2336 = vmatmul.mubr.bf16.gmra.mrb[0].mxu0 %v334
  %v2337 = vpop.f32.mrb[0].mxu0
  %v2338 = vadd.f32 %v2282, %v2337
  %v2339 = vpop.f32.mrb[0].mxu0
  %v2340 = vpop.f32.mrb[0].mxu0
  %v2341 = vadd.f32 %v2282, %v2340
  %v2342 = vpop.f32.mrb[0].mxu0
  %2343 = vmatprep.mubr.bf16.mxu0 0
  %2344 = vmatmul.mubr.bf16.gmra.mrb[0].mxu0 %v337
  %v2345 = vpop.f32.mrb[0].mxu0
  %v2346 = vadd.f32 %v2282, %v2345
  %v2347 = vpop.f32.mrb[0].mxu0
  %v2348 = vpop.f32.mrb[0].mxu0
  %v2349 = vadd.f32 %v2282, %v2348
  %v2350 = vpop.f32.mrb[0].mxu0
  %2351 = vmatprep.mubr.bf16.mxu0 0
  %2352 = vmatmul.mubr.bf16.gmra.mrb[0].mxu0 %v340
  %v2353 = vpop.f32.mrb[0].mxu0
  %v2354 = vadd.f32 %v2282, %v2353
  %v2355 = vpop.f32.mrb[0].mxu0
  %v2356 = vpop.f32.mrb[0].mxu0
  %v2357 = vadd.f32 %v2282, %v2356
  %v2358 = vpop.f32.mrb[0].mxu0
  %2359 = vmatprep.mubr.bf16.mxu0 0
  %2360 = vmatmul.mubr.bf16.gmra.mrb[0].mxu0 %v343
  %v2361 = vpop.f32.mrb[0].mxu0
  %v2362 = vadd.f32 %v2282, %v2361
  %v2363 = vpop.f32.mrb[0].mxu0
  %v2364 = vpop.f32.mrb[0].mxu0
  %v2365 = vadd.f32 %v2282, %v2364
  %v2366 = vpop.f32.mrb[0].mxu0
  %2367 = vmatprep.mubr.bf16.mxu0 0
  %2368 = vmatmul.mubr.bf16.gmra.mrb[0].mxu0 %v346
  %v2369 = vpop.f32.mrb[0].mxu0
  %v2370 = vadd.f32 %v2282, %v2369
  %v2371 = vpop.f32.mrb[0].mxu0
  %v2372 = vpop.f32.mrb[0].mxu0
  %v2373 = vadd.f32 %v2282, %v2372
  %v2374 = vpop.f32.mrb[0].mxu0
  %2375 = vmatprep.mubr.bf16.mxu0 0
  %2376 = vmatmul.mubr.bf16.gmra.mrb[0].mxu0 %v349
  %v2377 = vpop.f32.mrb[0].mxu0
  %v2378 = vadd.f32 %v2282, %v2377
  %v2379 = vpop.f32.mrb[0].mxu0
  %v2380 = vpop.f32.mrb[0].mxu0
  %v2381 = vadd.f32 %v2282, %v2380
  %v2382 = vpop.f32.mrb[0].mxu0
  %2383 = vmatprep.mubr.bf16.mxu0 0
  %2384 = vmatmul.mubr.bf16.gmra.mrb[0].mxu0 %v352
  %v2385 = vpop.f32.mrb[0].mxu0
  %v2386 = vadd.f32 %v2282, %v2385
  %v2387 = vpop.f32.mrb[0].mxu0
  %v2388 = vpop.f32.mrb[0].mxu0
  %v2389 = vadd.f32 %v2282, %v2388
  %v2390 = vpop.f32.mrb[0].mxu0
  %2391 = vmatprep.mubr.bf16.mxu0 0
  %2392 = vmatmul.mubr.bf16.gmra.mrb[0].mxu0 %v355
  %v2393 = vpop.f32.mrb[0].mxu0
  %v2394 = vadd.f32 %v2282, %v2393
  %v2395 = vpop.f32.mrb[0].mxu0
  %v2396 = vpop.f32.mrb[0].mxu0
  %v2397 = vadd.f32 %v2282, %v2396
  %v2398 = vpop.f32.mrb[0].mxu0
  %2399 = vmatprep.mubr.bf16.mxu0 0
  %2400 = vmatmul.mubr.bf16.gmra.mrb[0].mxu0 %v358
  %v2401 = vpop.f32.mrb[0].mxu0
  %v2402 = vadd.f32 %v2282, %v2401
  %v2403 = vpop.f32.mrb[0].mxu0
  %v2404 = vpop.f32.mrb[0].mxu0
  %v2405 = vadd.f32 %v2282, %v2404
  %v2406 = vpop.f32.mrb[0].mxu0
  %2407 = vmatprep.mubr.bf16.mxu0 0
  %2408 = vmatmul.mubr.bf16.gmra.mrb[0].mxu0 %v361
  %v2409 = vpop.f32.mrb[0].mxu0
  %v2410 = vadd.f32 %v2282, %v2409
  %v2411 = vpop.f32.mrb[0].mxu0
  %v2412 = vpop.f32.mrb[0].mxu0
  %v2413 = vadd.f32 %v2282, %v2412
  %v2414 = vpop.f32.mrb[0].mxu0
  %2415 = vmatprep.mubr.bf16.mxu0 0
  %2416 = vmatmul.mubr.bf16.gmra.mrb[0].mxu0 %v364
  %v2417 = vpop.f32.mrb[0].mxu0
  %v2418 = vadd.f32 %v2282, %v2417
  %v2419 = vpop.f32.mrb[0].mxu0
  %v2420 = vpop.f32.mrb[0].mxu0
  %v2421 = vadd.f32 %v2282, %v2420
  %v2422 = vpop.f32.mrb[0].mxu0
  %2423 = vmatprep.mubr.bf16.mxu0 0
  %2424 = vmatmul.mubr.bf16.gmra.mrb[0].mxu0 %v367
  %v2425 = vpop.f32.mrb[0].mxu0
  %v2426 = vadd.f32 %v2282, %v2425
  %v2427 = vpop.f32.mrb[0].mxu0
  %v2428 = vpop.f32.mrb[0].mxu0
  %v2429 = vadd.f32 %v2282, %v2428
  %v2430 = vpop.f32.mrb[0].mxu0
  %2431 = vmatprep.mubr.bf16.mxu0 0
  %2432 = vmatmul.mubr.bf16.gmra.mrb[0].mxu0 %v370
  %v2433 = vpop.f32.mrb[0].mxu0
  %v2434 = vadd.f32 %v2282, %v2433
  %v2435 = vpop.f32.mrb[0].mxu0
  %v2436 = vpop.f32.mrb[0].mxu0
  %v2437 = vadd.f32 %v2282, %v2436
  %v2438 = vpop.f32.mrb[0].mxu0
  %2439 = vmatprep.mubr.bf16.mxu0 0
  %2440 = vmatmul.mubr.bf16.gmra.mrb[0].mxu0 %v373
  %v2441 = vpop.f32.mrb[0].mxu0
  %v2442 = vadd.f32 %v2282, %v2441
  %v2443 = vpop.f32.mrb[0].mxu0
  %v2444 = vpop.f32.mrb[0].mxu0
  %v2445 = vadd.f32 %v2282, %v2444
  %v2446 = vpop.f32.mrb[0].mxu0
  %2447 = vmatprep.mubr.bf16.mxu0 0
  %2448 = vmatmul.mubr.bf16.gmra.mrb[0].mxu0 %v376
  %v2449 = vpop.f32.mrb[0].mxu0
  %v2450 = vadd.f32 %v2282, %v2449
  %v2451 = vpop.f32.mrb[0].mxu0
  %v2452 = vpop.f32.mrb[0].mxu0
  %v2453 = vadd.f32 %v2282, %v2452
  %v2454 = vpop.f32.mrb[0].mxu0
  %2455 = vmatprep.mubr.bf16.mxu0 0
  %2456 = vmatmul.mubr.bf16.gmra.mrb[0].mxu0 %v379
  %v2457 = vpop.f32.mrb[0].mxu0
  %v2458 = vadd.f32 %v2282, %v2457
  %v2459 = vpop.f32.mrb[0].mxu0
  %v2460 = vpop.f32.mrb[0].mxu0
  %v2461 = vadd.f32 %v2282, %v2460
  %v2462 = vpop.f32.mrb[0].mxu0
  %2463 = vmatprep.mubr.bf16.mxu0 0
  %2464 = vmatmul.mubr.bf16.gmra.mrb[0].mxu0 %v382
  %v2465 = vpop.f32.mrb[0].mxu0
  %v2466 = vadd.f32 %v2282, %v2465
  %v2467 = vpop.f32.mrb[0].mxu0
  %v2468 = vpop.f32.mrb[0].mxu0
  %v2469 = vadd.f32 %v2282, %v2468
  %v2470 = vpop.f32.mrb[0].mxu0
  %2471 = vmatprep.mubr.bf16.mxu0 0
  %2472 = vmatmul.mubr.bf16.gmra.mrb[0].mxu0 %v385
  %v2473 = vpop.f32.mrb[0].mxu0
  %v2474 = vadd.f32 %v2282, %v2473
  %v2475 = vpop.f32.mrb[0].mxu0
  %v2476 = vpop.f32.mrb[0].mxu0
  %v2477 = vadd.f32 %v2282, %v2476
  %v2478 = vpop.f32.mrb[0].mxu0
  %2479 = vmatprep.mubr.bf16.mxu0 0
  %2480 = vmatmul.mubr.bf16.gmra.mrb[0].mxu0 %v388
  %v2481 = vpop.f32.mrb[0].mxu0
  %v2482 = vadd.f32 %v2282, %v2481
  %v2483 = vpop.f32.mrb[0].mxu0
  %v2484 = vpop.f32.mrb[0].mxu0
  %v2485 = vadd.f32 %v2282, %v2484
  %v2486 = vpop.f32.mrb[0].mxu0
  %2487 = vmatprep.mubr.bf16.mxu0 0
  %2488 = vmatmul.mubr.bf16.gmra.mrb[0].mxu0 %v391
  %v2489 = vpop.f32.mrb[0].mxu0
  %v2490 = vadd.f32 %v2282, %v2489
  %v2491 = vpop.f32.mrb[0].mxu0
  %v2492 = vpop.f32.mrb[0].mxu0
  %v2493 = vadd.f32 %v2282, %v2492
  %v2494 = vpop.f32.mrb[0].mxu0
  %2495 = vmatprep.mubr.bf16.mxu0 0
  %2496 = vmatmul.mubr.bf16.gmra.mrb[0].mxu0 %v394
  %v2497 = vpop.f32.mrb[0].mxu0
  %v2498 = vadd.f32 %v2282, %v2497
  %v2499 = vpop.f32.mrb[0].mxu0
  %v2500 = vpop.f32.mrb[0].mxu0
  %v2501 = vadd.f32 %v2282, %v2500
  %v2502 = vpop.f32.mrb[0].mxu0
  %2503 = vmatprep.mubr.bf16.mxu0 0
  %2504 = vmatmul.mubr.bf16.gmra.mrb[0].mxu0 %v397
  %v2505 = vpop.f32.mrb[0].mxu0
  %v2506 = vadd.f32 %v2282, %v2505
  %v2507 = vpop.f32.mrb[0].mxu0
  %v2508 = vpop.f32.mrb[0].mxu0
  %v2509 = vadd.f32 %v2282, %v2508
  %v2510 = vpop.f32.mrb[0].mxu0
  %2511 = vmatprep.mubr.bf16.mxu0 0
  %2512 = vmatmul.mubr.bf16.gmra.mrb[0].mxu0 %v400
  %v2513 = vpop.f32.mrb[0].mxu0
  %v2514 = vadd.f32 %v2282, %v2513
  %v2515 = vpop.f32.mrb[0].mxu0
  %v2516 = vpop.f32.mrb[0].mxu0
  %v2517 = vadd.f32 %v2282, %v2516
  %v2518 = vpop.f32.mrb[0].mxu0
  %2519 = vmatprep.mubr.bf16.mxu0 0
  %2520 = vmatmul.mubr.bf16.gmra.mrb[0].mxu0 %v403
  %v2521 = vpop.f32.mrb[0].mxu0
  %v2522 = vadd.f32 %v2282, %v2521
  %v2523 = vpop.f32.mrb[0].mxu0
  %v2524 = vpop.f32.mrb[0].mxu0
  %v2525 = vadd.f32 %v2282, %v2524
  %v2526 = vpop.f32.mrb[0].mxu0
  %2527 = vmatprep.mubr.bf16.mxu0 0
  %2528 = vmatmul.mubr.bf16.gmra.mrb[0].mxu0 %v406
  %v2529 = vpop.f32.mrb[0].mxu0
  %v2530 = vadd.f32 %v2282, %v2529
  %v2531 = vpop.f32.mrb[0].mxu0
  %v2532 = vpop.f32.mrb[0].mxu0
  %v2533 = vadd.f32 %v2282, %v2532
  %v2534 = vpop.f32.mrb[0].mxu0
  %2535 = vmatprep.mubr.bf16.mxu0 0
  %2536 = vmatmul.mubr.bf16.gmra.mrb[0].mxu0 %v409
  %v2537 = vpop.f32.mrb[0].mxu0
  %v2538 = vadd.f32 %v2282, %v2537
  %v2539 = vpop.f32.mrb[0].mxu0
  %v2540 = vpop.f32.mrb[0].mxu0
  %v2541 = vadd.f32 %v2282, %v2540
  %v2542 = vpop.f32.mrb[0].mxu0
  %2543 = vmatprep.mubr.bf16.mxu0 0
  %2544 = vmatmul.mubr.bf16.gmra.mrb[0].mxu0 %v412
  %v2545 = vpop.f32.mrb[0].mxu0
  %v2546 = vadd.f32 %v2282, %v2545
  %v2547 = vpop.f32.mrb[0].mxu0
  %v2548 = vpop.f32.mrb[0].mxu0
  %v2549 = vadd.f32 %v2282, %v2548
  %v2550 = vpop.f32.mrb[0].mxu0
  %2551 = vmatprep.mubr.bf16.mxu0 0
  %2552 = vmatmul.mubr.bf16.gmra.mrb[0].mxu0 %v415
  %v2553 = vpop.f32.mrb[0].mxu0
  %v2554 = vadd.f32 %v2282, %v2553
  %v2555 = vpop.f32.mrb[0].mxu0
  %v2556 = vpop.f32.mrb[0].mxu0
  %v2557 = vadd.f32 %v2282, %v2556
  %v2558 = vpop.f32.mrb[0].mxu0
  %2559 = vmatprep.mubr.bf16.mxu0 0
  %2560 = vmatmul.mubr.bf16.gmra.mrb[0].mxu0 %v418
  %v2561 = vpop.f32.mrb[0].mxu0
  %v2562 = vadd.f32 %v2282, %v2561
  %v2563 = vpop.f32.mrb[0].mxu0
  %v2564 = vpop.f32.mrb[0].mxu0
  %v2565 = vadd.f32 %v2282, %v2564
  %v2566 = vpop.f32.mrb[0].mxu0
  %2567 = vmatprep.mubr.bf16.mxu0 0
  %2568 = vmatmul.mubr.bf16.gmra.mrb[0].mxu0 %v421
  %v2569 = vpop.f32.mrb[0].mxu0
  %v2570 = vadd.f32 %v2282, %v2569
  %v2571 = vpop.f32.mrb[0].mxu0
  %v2572 = vpop.f32.mrb[0].mxu0
  %v2573 = vadd.f32 %v2282, %v2572
  %v2574 = vpop.f32.mrb[0].mxu0
  %2575 = vdwg.mxu0
  %v2576 = vpack.c.bf16 %v2325, %v2322
  %v2577 = vpack.c.bf16 %v2333, %v2330
  %v2578 = vpack.c.bf16 %v2341, %v2338
  %v2579 = vpack.c.bf16 %v2349, %v2346
  %v2580 = vpack.c.bf16 %v2357, %v2354
  %v2581 = vpack.c.bf16 %v2365, %v2362
  %v2582 = vpack.c.bf16 %v2373, %v2370
  %v2583 = vpack.c.bf16 %v2381, %v2378
  %v2584 = vpack.c.bf16 %v2389, %v2386
  %v2585 = vpack.c.bf16 %v2397, %v2394
  %v2586 = vpack.c.bf16 %v2405, %v2402
  %v2587 = vpack.c.bf16 %v2413, %v2410
  %v2588 = vpack.c.bf16 %v2421, %v2418
  %v2589 = vpack.c.bf16 %v2429, %v2426
  %v2590 = vpack.c.bf16 %v2437, %v2434
  %v2591 = vpack.c.bf16 %v2445, %v2442
  %v2592 = vpack.c.bf16 %v2453, %v2450
  %v2593 = vpack.c.bf16 %v2461, %v2458
  %v2594 = vpack.c.bf16 %v2469, %v2466
  %v2595 = vpack.c.bf16 %v2477, %v2474
  %v2596 = vpack.c.bf16 %v2485, %v2482
  %v2597 = vpack.c.bf16 %v2493, %v2490
  %v2598 = vpack.c.bf16 %v2501, %v2498
  %v2599 = vpack.c.bf16 %v2509, %v2506
  %v2600 = vpack.c.bf16 %v2517, %v2514
  %v2601 = vpack.c.bf16 %v2525, %v2522
  %v2602 = vpack.c.bf16 %v2533, %v2530
  %v2603 = vpack.c.bf16 %v2541, %v2538
  %v2604 = vpack.c.bf16 %v2549, %v2546
  %v2605 = vpack.c.bf16 %v2557, %v2554
  %v2606 = vpack.c.bf16 %v2565, %v2562
  %v2607 = vpack.c.bf16 %v2573, %v2570
  %v2640 = vunpack.c.l.b16 %v2576
  %v2641 = vunpack.c.h.b16 %v2576
  %v2642 = vunpack.c.l.b16 %v2577
  %v2643 = vunpack.c.h.b16 %v2577
  %v2644 = vunpack.c.l.b16 %v2578
  %v2645 = vunpack.c.h.b16 %v2578
  %v2646 = vunpack.c.l.b16 %v2579
  %v2647 = vunpack.c.h.b16 %v2579
  %v2648 = vunpack.c.l.b16 %v2580
  %v2649 = vunpack.c.h.b16 %v2580
  %v2650 = vunpack.c.l.b16 %v2581
  %v2651 = vunpack.c.h.b16 %v2581
  %v2652 = vunpack.c.l.b16 %v2582
  %v2653 = vunpack.c.h.b16 %v2582
  %v2654 = vunpack.c.l.b16 %v2583
  %v2655 = vunpack.c.h.b16 %v2583
  %v2656 = vunpack.c.l.b16 %v2584
  %v2657 = vunpack.c.h.b16 %v2584
  %v2658 = vunpack.c.l.b16 %v2585
  %v2659 = vunpack.c.h.b16 %v2585
  %v2660 = vunpack.c.l.b16 %v2586
  %v2661 = vunpack.c.h.b16 %v2586
  %v2662 = vunpack.c.l.b16 %v2587
  %v2663 = vunpack.c.h.b16 %v2587
  %v2664 = vunpack.c.l.b16 %v2588
  %v2665 = vunpack.c.h.b16 %v2588
  %v2666 = vunpack.c.l.b16 %v2589
  %v2667 = vunpack.c.h.b16 %v2589
  %v2668 = vunpack.c.l.b16 %v2590
  %v2669 = vunpack.c.h.b16 %v2590
  %v2670 = vunpack.c.l.b16 %v2591
  %v2671 = vunpack.c.h.b16 %v2591
  %v2672 = vunpack.c.l.b16 %v2592
  %v2673 = vunpack.c.h.b16 %v2592
  %v2674 = vunpack.c.l.b16 %v2593
  %v2675 = vunpack.c.h.b16 %v2593
  %v2676 = vunpack.c.l.b16 %v2594
  %v2677 = vunpack.c.h.b16 %v2594
  %v2678 = vunpack.c.l.b16 %v2595
  %v2679 = vunpack.c.h.b16 %v2595
  %v2680 = vunpack.c.l.b16 %v2596
  %v2681 = vunpack.c.h.b16 %v2596
  %v2682 = vunpack.c.l.b16 %v2597
  %v2683 = vunpack.c.h.b16 %v2597
  %v2684 = vunpack.c.l.b16 %v2598
  %v2685 = vunpack.c.h.b16 %v2598
  %v2686 = vunpack.c.l.b16 %v2599
  %v2687 = vunpack.c.h.b16 %v2599
  %v2688 = vunpack.c.l.b16 %v2600
  %v2689 = vunpack.c.h.b16 %v2600
  %v2690 = vunpack.c.l.b16 %v2601
  %v2691 = vunpack.c.h.b16 %v2601
  %v2692 = vunpack.c.l.b16 %v2602
  %v2693 = vunpack.c.h.b16 %v2602
  %v2694 = vunpack.c.l.b16 %v2603
  %v2695 = vunpack.c.h.b16 %v2603
  %v2696 = vunpack.c.l.b16 %v2604
  %v2697 = vunpack.c.h.b16 %v2604
  %v2698 = vunpack.c.l.b16 %v2605
  %v2699 = vunpack.c.h.b16 %v2605
  %v2700 = vunpack.c.l.b16 %v2606
  %v2701 = vunpack.c.h.b16 %v2606
  %v2702 = vunpack.c.l.b16 %v2607
  %v2703 = vunpack.c.h.b16 %v2607
  %v2704 = vpack.c.b16 %v2640, %v2640
  %v2705 = vpack.c.b16 %v2641, %v2641
  %v2706 = vpack.c.b16 %v2642, %v2642
  %v2707 = vpack.c.b16 %v2643, %v2643
  %v2708 = vpack.c.b16 %v2644, %v2644
  %v2709 = vpack.c.b16 %v2645, %v2645
  %v2710 = vpack.c.b16 %v2646, %v2646
  %v2711 = vpack.c.b16 %v2647, %v2647
  %v2712 = vpack.c.b16 %v2648, %v2648
  %v2713 = vpack.c.b16 %v2649, %v2649
  %v2714 = vpack.c.b16 %v2650, %v2650
  %v2715 = vpack.c.b16 %v2651, %v2651
  %v2716 = vpack.c.b16 %v2652, %v2652
  %v2717 = vpack.c.b16 %v2653, %v2653
  %v2718 = vpack.c.b16 %v2654, %v2654
  %v2719 = vpack.c.b16 %v2655, %v2655
  %v2720 = vpack.c.b16 %v2656, %v2656
  %v2721 = vpack.c.b16 %v2657, %v2657
  %v2722 = vpack.c.b16 %v2658, %v2658
  %v2723 = vpack.c.b16 %v2659, %v2659
  %v2724 = vpack.c.b16 %v2660, %v2660
  %v2725 = vpack.c.b16 %v2661, %v2661
  %v2726 = vpack.c.b16 %v2662, %v2662
  %v2727 = vpack.c.b16 %v2663, %v2663
  %v2728 = vpack.c.b16 %v2664, %v2664
  %v2729 = vpack.c.b16 %v2665, %v2665
  %v2730 = vpack.c.b16 %v2666, %v2666
  %v2731 = vpack.c.b16 %v2667, %v2667
  %v2732 = vpack.c.b16 %v2668, %v2668
  %v2733 = vpack.c.b16 %v2669, %v2669
  %v2734 = vpack.c.b16 %v2670, %v2670
  %v2735 = vpack.c.b16 %v2671, %v2671
  %v2736 = vpack.c.b16 %v2672, %v2672
  %v2737 = vpack.c.b16 %v2673, %v2673
  %v2738 = vpack.c.b16 %v2674, %v2674
  %v2739 = vpack.c.b16 %v2675, %v2675
  %v2740 = vpack.c.b16 %v2676, %v2676
  %v2741 = vpack.c.b16 %v2677, %v2677
  %v2742 = vpack.c.b16 %v2678, %v2678
  %v2743 = vpack.c.b16 %v2679, %v2679
  %v2744 = vpack.c.b16 %v2680, %v2680
  %v2745 = vpack.c.b16 %v2681, %v2681
  %v2746 = vpack.c.b16 %v2682, %v2682
  %v2747 = vpack.c.b16 %v2683, %v2683
  %v2748 = vpack.c.b16 %v2684, %v2684
  %v2749 = vpack.c.b16 %v2685, %v2685
  %v2750 = vpack.c.b16 %v2686, %v2686
  %v2751 = vpack.c.b16 %v2687, %v2687
  %v2752 = vpack.c.b16 %v2688, %v2688
  %v2753 = vpack.c.b16 %v2689, %v2689
  %v2754 = vpack.c.b16 %v2690, %v2690
  %v2755 = vpack.c.b16 %v2691, %v2691
  %v2756 = vpack.c.b16 %v2692, %v2692
  %v2757 = vpack.c.b16 %v2693, %v2693
  %v2758 = vpack.c.b16 %v2694, %v2694
  %v2759 = vpack.c.b16 %v2695, %v2695
  %v2760 = vpack.c.b16 %v2696, %v2696
  %v2761 = vpack.c.b16 %v2697, %v2697
  %v2762 = vpack.c.b16 %v2698, %v2698
  %v2763 = vpack.c.b16 %v2699, %v2699
  %v2764 = vpack.c.b16 %v2700, %v2700
  %v2765 = vpack.c.b16 %v2701, %v2701
  %v2766 = vpack.c.b16 %v2702, %v2702
  %v2767 = vpack.c.b16 %v2703, %v2703
  %2832 = vst.msk [vmem:[%s11] sm:$0xf] %vm1591, %v2704
  %2833 = vst.msk [vmem:[%s11 + $0x4] sm:$0xf] %vm1591, %v2705
  %2834 = vst.msk [vmem:[%s11 + $0x8] sm:$0xf] %vm1591, %v2706
  %2835 = vst.msk [vmem:[%s11 + $0xc] sm:$0xf] %vm1591, %v2707
  %2836 = vst.msk [vmem:[%s11 + $0x10] sm:$0xf] %vm1591, %v2708
  %2837 = vst.msk [vmem:[%s11 + $0x14] sm:$0xf] %vm1591, %v2709
  %2838 = vst.msk [vmem:[%s11 + $0x18] sm:$0xf] %vm1591, %v2710
  %2839 = vst.msk [vmem:[%s11 + $0x1c] sm:$0xf] %vm1591, %v2711
  %2840 = vst.msk [vmem:[%s11 + $0x20] sm:$0xf] %vm1591, %v2712
  %2841 = vst.msk [vmem:[%s11 + $0x24] sm:$0xf] %vm1591, %v2713
  %2842 = vst.msk [vmem:[%s11 + $0x28] sm:$0xf] %vm1591, %v2714
  %2843 = vst.msk [vmem:[%s11 + $0x2c] sm:$0xf] %vm1591, %v2715
  %2844 = vst.msk [vmem:[%s11 + $0x30] sm:$0xf] %vm1591, %v2716
  %2845 = vst.msk [vmem:[%s11 + $0x34] sm:$0xf] %vm1591, %v2717
  %2846 = vst.msk [vmem:[%s11 + $0x38] sm:$0xf] %vm1591, %v2718
  %2847 = vst.msk [vmem:[%s11 + $0x3c] sm:$0xf] %vm1591, %v2719
  %2848 = vst.msk [vmem:[%s11 + $0x40] sm:$0xf] %vm1591, %v2720
  %2849 = vst.msk [vmem:[%s11 + $0x44] sm:$0xf] %vm1591, %v2721
  %2850 = vst.msk [vmem:[%s11 + $0x48] sm:$0xf] %vm1591, %v2722
  %2851 = vst.msk [vmem:[%s11 + $0x4c] sm:$0xf] %vm1591, %v2723
  %2852 = vst.msk [vmem:[%s11 + $0x50] sm:$0xf] %vm1591, %v2724
  %2853 = vst.msk [vmem:[%s11 + $0x54] sm:$0xf] %vm1591, %v2725
  %2854 = vst.msk [vmem:[%s11 + $0x58] sm:$0xf] %vm1591, %v2726
  %2855 = vst.msk [vmem:[%s11 + $0x5c] sm:$0xf] %vm1591, %v2727
  %2856 = vst.msk [vmem:[%s11 + $0x60] sm:$0xf] %vm1591, %v2728
  %2857 = vst.msk [vmem:[%s11 + $0x64] sm:$0xf] %vm1591, %v2729
  %2858 = vst.msk [vmem:[%s11 + $0x68] sm:$0xf] %vm1591, %v2730
  %2859 = vst.msk [vmem:[%s11 + $0x6c] sm:$0xf] %vm1591, %v2731
  %2860 = vst.msk [vmem:[%s11 + $0x70] sm:$0xf] %vm1591, %v2732
  %2861 = vst.msk [vmem:[%s11 + $0x74] sm:$0xf] %vm1591, %v2733
  %2862 = vst.msk [vmem:[%s11 + $0x78] sm:$0xf] %vm1591, %v2734
  %2863 = vst.msk [vmem:[%s11 + $0x7c] sm:$0xf] %vm1591, %v2735
  %2864 = vst.msk [vmem:[%s11 + $0x80] sm:$0xf] %vm1591, %v2736
  %2865 = vst.msk [vmem:[%s11 + $0x84] sm:$0xf] %vm1591, %v2737
  %2866 = vst.msk [vmem:[%s11 + $0x88] sm:$0xf] %vm1591, %v2738
  %2867 = vst.msk [vmem:[%s11 + $0x8c] sm:$0xf] %vm1591, %v2739
  %2868 = vst.msk [vmem:[%s11 + $0x90] sm:$0xf] %vm1591, %v2740
  %2869 = vst.msk [vmem:[%s11 + $0x94] sm:$0xf] %vm1591, %v2741
  %2870 = vst.msk [vmem:[%s11 + $0x98] sm:$0xf] %vm1591, %v2742
  %2871 = vst.msk [vmem:[%s11 + $0x9c] sm:$0xf] %vm1591, %v2743
  %2872 = vst.msk [vmem:[%s11 + $0xa0] sm:$0xf] %vm1591, %v2744
  %2873 = vst.msk [vmem:[%s11 + $0xa4] sm:$0xf] %vm1591, %v2745
  %2874 = vst.msk [vmem:[%s11 + $0xa8] sm:$0xf] %vm1591, %v2746
  %2875 = vst.msk [vmem:[%s11 + $0xac] sm:$0xf] %vm1591, %v2747
  %2876 = vst.msk [vmem:[%s11 + $0xb0] sm:$0xf] %vm1591, %v2748
  %2877 = vst.msk [vmem:[%s11 + $0xb4] sm:$0xf] %vm1591, %v2749
  %2878 = vst.msk [vmem:[%s11 + $0xb8] sm:$0xf] %vm1591, %v2750
  %2879 = vst.msk [vmem:[%s11 + $0xbc] sm:$0xf] %vm1591, %v2751
  %2880 = vst.msk [vmem:[%s11 + $0xc0] sm:$0xf] %vm1591, %v2752
  %2881 = vst.msk [vmem:[%s11 + $0xc4] sm:$0xf] %vm1591, %v2753
  %2882 = vst.msk [vmem:[%s11 + $0xc8] sm:$0xf] %vm1591, %v2754
  %2883 = vst.msk [vmem:[%s11 + $0xcc] sm:$0xf] %vm1591, %v2755
  %2884 = vst.msk [vmem:[%s11 + $0xd0] sm:$0xf] %vm1591, %v2756
  %2885 = vst.msk [vmem:[%s11 + $0xd4] sm:$0xf] %vm1591, %v2757
  %2886 = vst.msk [vmem:[%s11 + $0xd8] sm:$0xf] %vm1591, %v2758
  %2887 = vst.msk [vmem:[%s11 + $0xdc] sm:$0xf] %vm1591, %v2759
  %2888 = vst.msk [vmem:[%s11 + $0xe0] sm:$0xf] %vm1591, %v2760
  %2889 = vst.msk [vmem:[%s11 + $0xe4] sm:$0xf] %vm1591, %v2761
  %2890 = vst.msk [vmem:[%s11 + $0xe8] sm:$0xf] %vm1591, %v2762
  %2891 = vst.msk [vmem:[%s11 + $0xec] sm:$0xf] %vm1591, %v2763
  %2892 = vst.msk [vmem:[%s11 + $0xf0] sm:$0xf] %vm1591, %v2764
  %2893 = vst.msk [vmem:[%s11 + $0xf4] sm:$0xf] %vm1591, %v2765
  %2894 = vst.msk [vmem:[%s11 + $0xf8] sm:$0xf] %vm1591, %v2766
  %2895 = vst.msk [vmem:[%s11 + $0xfc] sm:$0xf] %vm1591, %v2767
  // Predicated region
  $region38: #{tpu_custom_call.1} parent=0 // pred_check
    _
  $region39: #{tpu_custom_call.1} parent=0 // pred_check_branch
    %2897 = sbr.rel (0) target = $region41
  $region40: #{tpu_custom_call.1} parent=0 // pred_region
    _
  $region41: #{tpu_custom_call.1} parent=0 // pred_fallthru
    _
  // Predicated region
  $region42: #{tpu_custom_call.1} parent=0 // pred_check
    _
  $region43: #{tpu_custom_call.1} parent=0 // pred_check_branch
    %2899 = sbr.rel (0) target = $region45
  $region44: #{tpu_custom_call.1} parent=0 // pred_region
    _
  $region45: #{tpu_custom_call.1} parent=0 // pred_fallthru
    _
  // Predicated region
  $region46: #{tpu_custom_call.1} parent=0 // pred_check
    _
  $region47: #{tpu_custom_call.1} parent=0 // pred_check_branch
    %2901 = sbr.rel (0) target = $region49
  $region48: #{tpu_custom_call.1} parent=0 // pred_region
    _
  $region49: #{tpu_custom_call.1} parent=0 // pred_fallthru
    _
  // Predicated region
  $region50: #{tpu_custom_call.1} parent=0 // pred_check
    _
  $region51: #{tpu_custom_call.1} parent=0 // pred_check_branch
    %2903 = sbr.rel (0) target = $region53
  $region52: #{tpu_custom_call.1} parent=0 // pred_region
    _
  $region53: #{tpu_custom_call.1} parent=0 // pred_fallthru
    _
  // Predicated region
  $region54: #{tpu_custom_call.1} parent=0 // pred_check
    _
  $region55: #{tpu_custom_call.1} parent=0 // pred_check_branch
    %2905 = sbr.rel (0) target = $region57
  $region56: #{tpu_custom_call.1} parent=0 // pred_region
    _
  $region57: #{tpu_custom_call.1} parent=0 // pred_fallthru
    _
  // Predicated region
  $region58: #{tpu_custom_call.1} parent=0 // pred_check
    _
  $region59: #{tpu_custom_call.1} parent=0 // pred_check_branch
    %2907 = sbr.rel (0) target = $region61
  $region60: #{tpu_custom_call.1} parent=0 // pred_region
    _
  $region61: #{tpu_custom_call.1} parent=0 // pred_fallthru
    _

</llo_original>
